<compile_context>
chip_gen: v7x
topology: tpu7x:2x2x1
jax: 0.10.0
libtpu: 0.0.40
codegen_flags: <defaults>
</compile_context>

<pallas_src>
import functools

import jax
import jax.numpy as jnp
import numpy as np
from jax.experimental import pallas as pl
from jax.experimental.pallas import tpu as pltpu


def mha_kernel(x_ref, wq_ref, wk_ref, wv_ref, bq_ref, bk_ref, bv_ref,
               wp_ref, bp_ref, watt_ref, gamma_ref, beta_ref,
               o_ref, acc_ref, *, num_heads, scaling, eps):
    x = x_ref[0]                       # (N, E) bf16 for this batch element
    N = x.shape[0]
    inv_nn = 1.0 / (N * N)

    # Hoisted (N, N) loads -- used by every head, loaded once.
    W = watt_ref[...]                  # learnable elementwise weight on attention map
    gamma = gamma_ref[...]             # LayerNorm weight
    beta = beta_ref[...]               # LayerNorm bias

    # Lane-dense f32 accumulator for the fused per-head output projection.
    acc_ref[...] = jnp.zeros_like(acc_ref)

    for h in range(num_heads):         # num_heads is small & static (unrolled)
        # Per-head projections: x @ W_h (weights pre-transposed, bf16 in / f32 out).
        qh = jnp.dot(x, wq_ref[h], preferred_element_type=jnp.float32) + bq_ref[h]
        kh = jnp.dot(x, wk_ref[h], preferred_element_type=jnp.float32) + bk_ref[h]
        vh = jnp.dot(x, wv_ref[h], preferred_element_type=jnp.float32) + bv_ref[h]

        # energy = einsum('qd,kd->qk'): contract last dims, no explicit transpose.
        energy = jax.lax.dot_general(
            qh.astype(jnp.bfloat16), kh.astype(jnp.bfloat16),
            dimension_numbers=(((1,), (1,)), ((), ())),
            preferred_element_type=jnp.float32)                      # (N, N)

        # softmax(energy * scaling, dim=-1), f32 stats, multiply by row reciprocal.
        logits = energy * scaling
        logits = logits - jnp.max(logits, axis=-1, keepdims=True)
        p = jnp.exp(logits)
        row_sum = jnp.sum(p, axis=-1, keepdims=True)
        att = p * pl.reciprocal(row_sum, approx=False)

        # LayerNorm([N, N]) over W * att -- one-pass statistics.
        wa = W * att
        mu = jnp.sum(wa) * inv_nn
        sumsq = jnp.sum(wa * wa) * inv_nn
        var = sumsq - mu * mu
        att_ln = (wa - mu) * jax.lax.rsqrt(var + eps) * gamma + beta

        # TODO(synk): self.att_drop (nn.Dropout) is identity in eval mode; omitted.
        # TODO(synk): optional `mask` argument of forward() not supported (mask=None path).

        # out_h = einsum('al,lv->av'); fold the output projection for this head
        # directly into the (N, E) accumulator (no concat, no lane slicing).
        head_out = jnp.dot(att_ln.astype(jnp.bfloat16), vh.astype(jnp.bfloat16),
                           preferred_element_type=jnp.float32)       # (N, d)
        acc_ref[...] += jnp.dot(head_out.astype(jnp.bfloat16), wp_ref[h],
                                preferred_element_type=jnp.float32)  # (N, E)

    o_ref[0] = (acc_ref[...] + bp_ref[...]).astype(o_ref.dtype)


def multi_head_attention(x, params, num_heads):
    """x: (B, N, E) f32. params: torch-layout tensors (see mha_reference)."""
    wq, bq, wk, bk, wv, bv, wp, bp, W, gamma, beta = params
    B, N, E = x.shape
    H = num_heads
    d = E // H
    scaling = float(d ** (-0.5))

    # --- Pre-layout the weights once in the wrapper (no .T inside the kernel) ---
    # nn.Linear stores (out_features, in_features); y = x @ w.T.
    # Per-head input-projection weight for head h: w.T[:, h*d:(h+1)*d]  -> (E, d).
    def split_in_proj(w):                               # (E, E) -> (H, E, d) bf16
        return jnp.transpose(w.reshape(H, d, E), (0, 2, 1)).astype(jnp.bfloat16)

    wq_h, wk_h, wv_h = split_in_proj(wq), split_in_proj(wk), split_in_proj(wv)
    bq_h = bq.reshape(H, 1, d).astype(jnp.float32)
    bk_h = bk.reshape(H, 1, d).astype(jnp.float32)
    bv_h = bv.reshape(H, 1, d).astype(jnp.float32)
    # Output projection: rows of wp.T belonging to head h -> (d, E).
    wp_h = jnp.transpose(wp).reshape(H, d, E).astype(jnp.bfloat16)
    bp_f = bp.reshape(1, E).astype(jnp.float32)
    W_f = W.astype(jnp.float32)
    gamma_f = gamma.astype(jnp.float32)
    beta_f = beta.astype(jnp.float32)
    x_bf = x.astype(jnp.bfloat16)

    kernel = functools.partial(mha_kernel, num_heads=H, scaling=scaling, eps=1e-5)

    def invariant(shape):
        n = len(shape)
        return pl.BlockSpec(shape, lambda b, _n=n: (0,) * _n)

    in_specs = [
        pl.BlockSpec((1, N, E), lambda b: (b, 0, 0)),   # x: one batch row per grid step
        invariant((H, E, d)),                           # Wq (per head, pre-transposed)
        invariant((H, E, d)),                           # Wk
        invariant((H, E, d)),                           # Wv
        invariant((H, 1, d)),                           # bq
        invariant((H, 1, d)),                           # bk
        invariant((H, 1, d)),                           # bv
        invariant((H, d, E)),                           # Wp (per head, pre-transposed)
        invariant((1, E)),                              # bp
        invariant((N, N)),                              # self.W
        invariant((N, N)),                              # LayerNorm gamma
        invariant((N, N)),                              # LayerNorm beta
    ]
    out_spec = pl.BlockSpec((1, N, E), lambda b: (b, 0, 0))

    operands = (x_bf, wq_h, wk_h, wv_h, bq_h, bk_h, bv_h, wp_h, bp_f,
                W_f, gamma_f, beta_f)

    flops = 2 * B * H * N * d * (4 * E + 2 * N)          # qkv + energy + att@V + proj
    transcendentals = B * H * N * N                       # exp in softmax
    bytes_accessed = int(
        x_bf.size * 2
        + sum(int(a.size) * a.dtype.itemsize for a in operands[1:])
        + B * N * E * 4)

    return pl.pallas_call(
        kernel,
        out_shape=jax.ShapeDtypeStruct((B, N, E), jnp.float32),
        grid_spec=pltpu.PrefetchScalarGridSpec(
            num_scalar_prefetch=0,
            grid=(B,),
            in_specs=in_specs,
            out_specs=out_spec,
            scratch_shapes=[pltpu.VMEM((N, E), jnp.float32)],
        ),
        compiler_params=pltpu.CompilerParams(dimension_semantics=("parallel",)),
        cost_estimate=pl.CostEstimate(flops=flops,
                                      transcendentals=transcendentals,
                                      bytes_accessed=bytes_accessed),
    )(*operands)


def mha_reference(x, params, num_heads):
    """Pure-JAX f32 reference mirroring the PyTorch forward (eval mode, mask=None)."""
    wq, bq, wk, bk, wv, bv, wp, bp, W, gamma, beta = params
    B, N, E = x.shape
    d = E // num_heads
    scaling = d ** (-0.5)

    def split_heads(t):  # (B, N, E) -> (B, H, N, d)
        return t.reshape(B, N, num_heads, d).transpose(0, 2, 1, 3)

    q = split_heads(x @ wq.T + bq)
    k = split_heads(x @ wk.T + bk)
    v = split_heads(x @ wv.T + bv)
    energy = jnp.einsum('bhqd,bhkd->bhqk', q, k)
    att = jax.nn.softmax(energy * scaling, axis=-1)
    wa = W * att
    mu = jnp.mean(wa, axis=(-2, -1), keepdims=True)
    var = jnp.mean((wa - mu) ** 2, axis=(-2, -1), keepdims=True)
    att = (wa - mu) / jnp.sqrt(var + 1e-5) * gamma + beta
    out = jnp.einsum('bhal,bhlv->bhav', att, v)
    out = out.transpose(0, 2, 1, 3).reshape(B, N, E)
    return out @ wp.T + bp


if __name__ == "__main__":
    # Small shapes: batch=2, seq_len=8, emb_size=32, heads=4 (head_dim=8).
    B, N, E, H = 2, 8, 32, 4

    key = jax.random.PRNGKey(0)
    keys = jax.random.split(key, 8)
    x = jax.random.normal(keys[0], (B, N, E), jnp.float32)

    def make_linear(k, out_f, in_f, scale=0.05):
        kw, kb = jax.random.split(k)
        w = jax.random.normal(kw, (out_f, in_f), jnp.float32) * scale
        b = jax.random.normal(kb, (1, out_f), jnp.float32) * scale
        return w, b

    wq, bq = make_linear(keys[1], E, E)
    wk, bk = make_linear(keys[2], E, E)
    wv, bv = make_linear(keys[3], E, E)
    wp, bp = make_linear(keys[4], E, E)
    W = jax.random.normal(keys[5], (N, N), jnp.float32)        # self.W (randn)
    gamma = jnp.ones((N, N), jnp.float32)                       # LayerNorm weight
    beta = jnp.zeros((N, N), jnp.float32)                       # LayerNorm bias
    # Note: gate1/gate2/gate3 parameters exist in __init__ but are unused in forward.

    params = (wq, bq, wk, bk, wv, bv, wp, bp, W, gamma, beta)

    out = multi_head_attention(x, params, H)
    out = jax.block_until_ready(out)

    ref = mha_reference(x, params, H)
    # Kernel feeds the MXU bf16 operands (f32 accumulation); compare against the
    # pure-f32 reference with a bf16-appropriate tolerance.
    np.testing.assert_allclose(np.asarray(out), np.asarray(ref), atol=3e-2, rtol=3e-2)

    print("KERNEL_OK")
</pallas_src>

<mosaic_0001>
module attributes {stable_mosaic.version = 11 : i64} {
  func.func @mha_kernel(%arg0: i32, %arg1: memref<1x8x32xbf16, #tpu.memory_space<vmem>>, %arg2: memref<4x32x8xbf16, #tpu.memory_space<vmem>>, %arg3: memref<4x32x8xbf16, #tpu.memory_space<vmem>>, %arg4: memref<4x32x8xbf16, #tpu.memory_space<vmem>>, %arg5: memref<4x1x8xf32, #tpu.memory_space<vmem>>, %arg6: memref<4x1x8xf32, #tpu.memory_space<vmem>>, %arg7: memref<4x1x8xf32, #tpu.memory_space<vmem>>, %arg8: memref<4x8x32xbf16, #tpu.memory_space<vmem>>, %arg9: memref<1x32xf32, #tpu.memory_space<vmem>>, %arg10: memref<8x8xf32, #tpu.memory_space<vmem>>, %arg11: memref<8x8xf32, #tpu.memory_space<vmem>>, %arg12: memref<8x8xf32, #tpu.memory_space<vmem>>, %arg13: memref<1x8x32xf32, #tpu.memory_space<vmem>>, %arg14: memref<8x32xf32, #tpu.memory_space<vmem>>) attributes {dimension_semantics = [#tpu.dimension_semantics<parallel>], iteration_bounds = array<i64: 2>, scalar_prefetch = 0 : i64, scratch_operands = 1 : i64, tpu.core_type = #tpu.core_type<tc>, window_params = [{transform_indices = @transform_0, window_bounds = array<i64: 1, 8, 32>}, {pipeline_mode = #tpu.pipeline_mode<synchronous>, transform_indices = @transform_1, window_bounds = array<i64: 4, 32, 8>}, {pipeline_mode = #tpu.pipeline_mode<synchronous>, transform_indices = @transform_2, window_bounds = array<i64: 4, 32, 8>}, {pipeline_mode = #tpu.pipeline_mode<synchronous>, transform_indices = @transform_3, window_bounds = array<i64: 4, 32, 8>}, {pipeline_mode = #tpu.pipeline_mode<synchronous>, transform_indices = @transform_4, window_bounds = array<i64: 4, 1, 8>}, {pipeline_mode = #tpu.pipeline_mode<synchronous>, transform_indices = @transform_5, window_bounds = array<i64: 4, 1, 8>}, {pipeline_mode = #tpu.pipeline_mode<synchronous>, transform_indices = @transform_6, window_bounds = array<i64: 4, 1, 8>}, {pipeline_mode = #tpu.pipeline_mode<synchronous>, transform_indices = @transform_7, window_bounds = array<i64: 4, 8, 32>}, {pipeline_mode = #tpu.pipeline_mode<synchronous>, transform_indices = @transform_8, window_bounds = array<i64: 1, 32>}, {pipeline_mode = #tpu.pipeline_mode<synchronous>, transform_indices = @transform_9, window_bounds = array<i64: 8, 8>}, {pipeline_mode = #tpu.pipeline_mode<synchronous>, transform_indices = @transform_10, window_bounds = array<i64: 8, 8>}, {pipeline_mode = #tpu.pipeline_mode<synchronous>, transform_indices = @transform_11, window_bounds = array<i64: 8, 8>}, {transform_indices = @transform_12, window_bounds = array<i64: 1, 8, 32>}]} {
    %c0 = arith.constant 0 : index
    %c0_0 = arith.constant 0 : index
    %c0_1 = arith.constant 0 : index
    %0 = vector.load %arg1[%c0, %c0_0, %c0_1] : memref<1x8x32xbf16, #tpu.memory_space<vmem>>, vector<1x8x32xbf16>
    %1 = vector.shape_cast %0 : vector<1x8x32xbf16> to vector<8x32xbf16>
    %c0_2 = arith.constant 0 : index
    %c0_3 = arith.constant 0 : index
    %2 = vector.load %arg10[%c0_2, %c0_3] : memref<8x8xf32, #tpu.memory_space<vmem>>, vector<8x8xf32>
    %c0_4 = arith.constant 0 : index
    %c0_5 = arith.constant 0 : index
    %3 = vector.load %arg11[%c0_4, %c0_5] : memref<8x8xf32, #tpu.memory_space<vmem>>, vector<8x8xf32>
    %c0_6 = arith.constant 0 : index
    %c0_7 = arith.constant 0 : index
    %4 = vector.load %arg12[%c0_6, %c0_7] : memref<8x8xf32, #tpu.memory_space<vmem>>, vector<8x8xf32>
    %cst = arith.constant 0.000000e+00 : f32
    %5 = vector.broadcast %cst : f32 to vector<8x32xf32>
    %c0_8 = arith.constant 0 : index
    %c0_9 = arith.constant 0 : index
    %6 = vector.load %arg14[%c0_8, %c0_9] : memref<8x32xf32, #tpu.memory_space<vmem>>, vector<8x32xf32>
    tpu.vector_store %arg14[%c0_8, %c0_9], %5 {strides = array<i32>} : memref<8x32xf32, #tpu.memory_space<vmem>>, vector<8x32xf32>,
    %c0_10 = arith.constant 0 : index
    %c0_11 = arith.constant 0 : index
    %c0_12 = arith.constant 0 : index
    %7 = vector.load %arg2[%c0_10, %c0_11, %c0_12] : memref<4x32x8xbf16, #tpu.memory_space<vmem>>, vector<1x32x8xbf16>
    %8 = vector.shape_cast %7 : vector<1x32x8xbf16> to vector<32x8xbf16>
    %cst_13 = arith.constant dense<0.000000e+00> : vector<8x8xf32>
    %9 = tpu.matmul %1, %8, %cst_13 {dimension_numbers = #tpu.dot_dimension_numbers<[1], [0], [0], [1], [0, 0, 1, 1], [], []>} : vector<8x32xbf16>, vector<32x8xbf16>, vector<8x8xf32> -> vector<8x8xf32>
    %c0_14 = arith.constant 0 : index
    %c0_15 = arith.constant 0 : index
    %c0_16 = arith.constant 0 : index
    %10 = vector.load %arg5[%c0_14, %c0_15, %c0_16] : memref<4x1x8xf32, #tpu.memory_space<vmem>>, vector<1x1x8xf32>
    %11 = vector.shape_cast %10 : vector<1x1x8xf32> to vector<1x8xf32>
    %12 = vector.broadcast %11 : vector<1x8xf32> to vector<8x8xf32>
    %13 = arith.addf %9, %12 : vector<8x8xf32>
    %c0_17 = arith.constant 0 : index
    %c0_18 = arith.constant 0 : index
    %c0_19 = arith.constant 0 : index
    %14 = vector.load %arg3[%c0_17, %c0_18, %c0_19] : memref<4x32x8xbf16, #tpu.memory_space<vmem>>, vector<1x32x8xbf16>
    %15 = vector.shape_cast %14 : vector<1x32x8xbf16> to vector<32x8xbf16>
    %cst_20 = arith.constant dense<0.000000e+00> : vector<8x8xf32>
    %16 = tpu.matmul %1, %15, %cst_20 {dimension_numbers = #tpu.dot_dimension_numbers<[1], [0], [0], [1], [0, 0, 1, 1], [], []>} : vector<8x32xbf16>, vector<32x8xbf16>, vector<8x8xf32> -> vector<8x8xf32>
    %c0_21 = arith.constant 0 : index
    %c0_22 = arith.constant 0 : index
    %c0_23 = arith.constant 0 : index
    %17 = vector.load %arg6[%c0_21, %c0_22, %c0_23] : memref<4x1x8xf32, #tpu.memory_space<vmem>>, vector<1x1x8xf32>
    %18 = vector.shape_cast %17 : vector<1x1x8xf32> to vector<1x8xf32>
    %19 = vector.broadcast %18 : vector<1x8xf32> to vector<8x8xf32>
    %20 = arith.addf %16, %19 : vector<8x8xf32>
    %c0_24 = arith.constant 0 : index
    %c0_25 = arith.constant 0 : index
    %c0_26 = arith.constant 0 : index
    %21 = vector.load %arg4[%c0_24, %c0_25, %c0_26] : memref<4x32x8xbf16, #tpu.memory_space<vmem>>, vector<1x32x8xbf16>
    %22 = vector.shape_cast %21 : vector<1x32x8xbf16> to vector<32x8xbf16>
    %cst_27 = arith.constant dense<0.000000e+00> : vector<8x8xf32>
    %23 = tpu.matmul %1, %22, %cst_27 {dimension_numbers = #tpu.dot_dimension_numbers<[1], [0], [0], [1], [0, 0, 1, 1], [], []>} : vector<8x32xbf16>, vector<32x8xbf16>, vector<8x8xf32> -> vector<8x8xf32>
    %c0_28 = arith.constant 0 : index
    %c0_29 = arith.constant 0 : index
    %c0_30 = arith.constant 0 : index
    %24 = vector.load %arg7[%c0_28, %c0_29, %c0_30] : memref<4x1x8xf32, #tpu.memory_space<vmem>>, vector<1x1x8xf32>
    %25 = vector.shape_cast %24 : vector<1x1x8xf32> to vector<1x8xf32>
    %26 = vector.broadcast %25 : vector<1x8xf32> to vector<8x8xf32>
    %27 = arith.addf %23, %26 : vector<8x8xf32>
    %28 = arith.truncf %13 : vector<8x8xf32> to vector<8x8xbf16>
    %29 = arith.truncf %20 : vector<8x8xf32> to vector<8x8xbf16>
    %cst_31 = arith.constant dense<0.000000e+00> : vector<8x8xf32>
    %30 = tpu.matmul %28, %29, %cst_31 {dimension_numbers = #tpu.dot_dimension_numbers<[1], [1], [0], [0], [0, 0, 1, 0], [], []>} : vector<8x8xbf16>, vector<8x8xbf16>, vector<8x8xf32> -> vector<8x8xf32>
    %cst_32 = arith.constant 0.353553385 : f32
    %31 = vector.broadcast %cst_32 : f32 to vector<8x8xf32>
    %32 = arith.mulf %30, %31 : vector<8x8xf32>
    %cst_33 = arith.constant dense<0xFF800000> : vector<8xf32>
    %33 = vector.multi_reduction <maximumf>, %32, %cst_33 [1] : vector<8x8xf32> to vector<8xf32>
    %34 = vector.shape_cast %33 : vector<8xf32> to vector<8x1xf32>
    %35 = vector.broadcast %34 : vector<8x1xf32> to vector<8x8xf32>
    %36 = arith.subf %32, %35 : vector<8x8xf32>
    %37 = math.exp %36 : vector<8x8xf32>
    %cst_34 = arith.constant dense<0.000000e+00> : vector<8xf32>
    %38 = vector.multi_reduction <add>, %37, %cst_34 [1] : vector<8x8xf32> to vector<8xf32>
    %39 = vector.shape_cast %38 : vector<8xf32> to vector<8x1xf32>
    %40 = tpu.reciprocal %39 : vector<8x1xf32> -> vector<8x1xf32>
    %41 = vector.broadcast %40 : vector<8x1xf32> to vector<8x8xf32>
    %42 = arith.mulf %37, %41 : vector<8x8xf32>
    %43 = arith.mulf %2, %42 : vector<8x8xf32>
    %44 = vector.shape_cast %43 : vector<8x8xf32> to vector<1x8x8xf32>
    %cst_35 = arith.constant dense<0.000000e+00> : vector<1xf32>
    %45 = vector.multi_reduction <add>, %44, %cst_35 [1, 2] : vector<1x8x8xf32> to vector<1xf32>
    %46 = vector.shape_cast %45 : vector<1xf32> to vector<1x1x1xf32>
    %47 = vector.extract %46[0, 0, 0] : f32 from vector<1x1x1xf32>
    %cst_36 = arith.constant 1.562500e-02 : f32
    %48 = arith.mulf %47, %cst_36 : f32
    %49 = arith.mulf %43, %43 : vector<8x8xf32>
    %50 = vector.shape_cast %49 : vector<8x8xf32> to vector<1x8x8xf32>
    %cst_37 = arith.constant dense<0.000000e+00> : vector<1xf32>
    %51 = vector.multi_reduction <add>, %50, %cst_37 [1, 2] : vector<1x8x8xf32> to vector<1xf32>
    %52 = vector.shape_cast %51 : vector<1xf32> to vector<1x1x1xf32>
    %53 = vector.extract %52[0, 0, 0] : f32 from vector<1x1x1xf32>
    %cst_38 = arith.constant 1.562500e-02 : f32
    %54 = arith.mulf %53, %cst_38 : f32
    %55 = arith.mulf %48, %48 : f32
    %56 = arith.subf %54, %55 : f32
    %57 = vector.broadcast %48 : f32 to vector<8x8xf32>
    %58 = arith.subf %43, %57 : vector<8x8xf32>
    %cst_39 = arith.constant 9.99999974E-6 : f32
    %59 = arith.addf %56, %cst_39 : f32
    %60 = math.rsqrt %59 : f32
    %61 = vector.broadcast %60 : f32 to vector<8x8xf32>
    %62 = arith.mulf %58, %61 : vector<8x8xf32>
    %63 = arith.mulf %62, %3 : vector<8x8xf32>
    %64 = arith.addf %63, %4 : vector<8x8xf32>
    %65 = arith.truncf %64 : vector<8x8xf32> to vector<8x8xbf16>
    %66 = arith.truncf %27 : vector<8x8xf32> to vector<8x8xbf16>
    %cst_40 = arith.constant dense<0.000000e+00> : vector<8x8xf32>
    %67 = tpu.matmul %65, %66, %cst_40 {dimension_numbers = #tpu.dot_dimension_numbers<[1], [0], [0], [1], [0, 0, 1, 1], [], []>} : vector<8x8xbf16>, vector<8x8xbf16>, vector<8x8xf32> -> vector<8x8xf32>
    %c0_41 = arith.constant 0 : index
    %c0_42 = arith.constant 0 : index
    %68 = vector.load %arg14[%c0_41, %c0_42] : memref<8x32xf32, #tpu.memory_space<vmem>>, vector<8x32xf32>
    %69 = arith.truncf %67 : vector<8x8xf32> to vector<8x8xbf16>
    %c0_43 = arith.constant 0 : index
    %c0_44 = arith.constant 0 : index
    %c0_45 = arith.constant 0 : index
    %70 = vector.load %arg8[%c0_43, %c0_44, %c0_45] : memref<4x8x32xbf16, #tpu.memory_space<vmem>>, vector<1x8x32xbf16>
    %71 = vector.shape_cast %70 : vector<1x8x32xbf16> to vector<8x32xbf16>
    %cst_46 = arith.constant dense<0.000000e+00> : vector<8x32xf32>
    %72 = tpu.matmul %69, %71, %cst_46 {dimension_numbers = #tpu.dot_dimension_numbers<[1], [0], [0], [1], [0, 0, 1, 1], [], []>} : vector<8x8xbf16>, vector<8x32xbf16>, vector<8x32xf32> -> vector<8x32xf32>
    %73 = arith.addf %68, %72 : vector<8x32xf32>
    %c0_47 = arith.constant 0 : index
    %c0_48 = arith.constant 0 : index
    %74 = vector.load %arg14[%c0_47, %c0_48] : memref<8x32xf32, #tpu.memory_space<vmem>>, vector<8x32xf32>
    tpu.vector_store %arg14[%c0_47, %c0_48], %73 {strides = array<i32>} : memref<8x32xf32, #tpu.memory_space<vmem>>, vector<8x32xf32>,
    %c1 = arith.constant 1 : index
    %c0_49 = arith.constant 0 : index
    %c0_50 = arith.constant 0 : index
    %75 = vector.load %arg2[%c1, %c0_49, %c0_50] : memref<4x32x8xbf16, #tpu.memory_space<vmem>>, vector<1x32x8xbf16>
    %76 = vector.shape_cast %75 : vector<1x32x8xbf16> to vector<32x8xbf16>
    %cst_51 = arith.constant dense<0.000000e+00> : vector<8x8xf32>
    %77 = tpu.matmul %1, %76, %cst_51 {dimension_numbers = #tpu.dot_dimension_numbers<[1], [0], [0], [1], [0, 0, 1, 1], [], []>} : vector<8x32xbf16>, vector<32x8xbf16>, vector<8x8xf32> -> vector<8x8xf32>
    %c1_52 = arith.constant 1 : index
    %c0_53 = arith.constant 0 : index
    %c0_54 = arith.constant 0 : index
    %78 = vector.load %arg5[%c1_52, %c0_53, %c0_54] : memref<4x1x8xf32, #tpu.memory_space<vmem>>, vector<1x1x8xf32>
    %79 = vector.shape_cast %78 : vector<1x1x8xf32> to vector<1x8xf32>
    %80 = vector.broadcast %79 : vector<1x8xf32> to vector<8x8xf32>
    %81 = arith.addf %77, %80 : vector<8x8xf32>
    %c1_55 = arith.constant 1 : index
    %c0_56 = arith.constant 0 : index
    %c0_57 = arith.constant 0 : index
    %82 = vector.load %arg3[%c1_55, %c0_56, %c0_57] : memref<4x32x8xbf16, #tpu.memory_space<vmem>>, vector<1x32x8xbf16>
    %83 = vector.shape_cast %82 : vector<1x32x8xbf16> to vector<32x8xbf16>
    %cst_58 = arith.constant dense<0.000000e+00> : vector<8x8xf32>
    %84 = tpu.matmul %1, %83, %cst_58 {dimension_numbers = #tpu.dot_dimension_numbers<[1], [0], [0], [1], [0, 0, 1, 1], [], []>} : vector<8x32xbf16>, vector<32x8xbf16>, vector<8x8xf32> -> vector<8x8xf32>
    %c1_59 = arith.constant 1 : index
    %c0_60 = arith.constant 0 : index
    %c0_61 = arith.constant 0 : index
    %85 = vector.load %arg6[%c1_59, %c0_60, %c0_61] : memref<4x1x8xf32, #tpu.memory_space<vmem>>, vector<1x1x8xf32>
    %86 = vector.shape_cast %85 : vector<1x1x8xf32> to vector<1x8xf32>
    %87 = vector.broadcast %86 : vector<1x8xf32> to vector<8x8xf32>
    %88 = arith.addf %84, %87 : vector<8x8xf32>
    %c1_62 = arith.constant 1 : index
    %c0_63 = arith.constant 0 : index
    %c0_64 = arith.constant 0 : index
    %89 = vector.load %arg4[%c1_62, %c0_63, %c0_64] : memref<4x32x8xbf16, #tpu.memory_space<vmem>>, vector<1x32x8xbf16>
    %90 = vector.shape_cast %89 : vector<1x32x8xbf16> to vector<32x8xbf16>
    %cst_65 = arith.constant dense<0.000000e+00> : vector<8x8xf32>
    %91 = tpu.matmul %1, %90, %cst_65 {dimension_numbers = #tpu.dot_dimension_numbers<[1], [0], [0], [1], [0, 0, 1, 1], [], []>} : vector<8x32xbf16>, vector<32x8xbf16>, vector<8x8xf32> -> vector<8x8xf32>
    %c1_66 = arith.constant 1 : index
    %c0_67 = arith.constant 0 : index
    %c0_68 = arith.constant 0 : index
    %92 = vector.load %arg7[%c1_66, %c0_67, %c0_68] : memref<4x1x8xf32, #tpu.memory_space<vmem>>, vector<1x1x8xf32>
    %93 = vector.shape_cast %92 : vector<1x1x8xf32> to vector<1x8xf32>
    %94 = vector.broadcast %93 : vector<1x8xf32> to vector<8x8xf32>
    %95 = arith.addf %91, %94 : vector<8x8xf32>
    %96 = arith.truncf %81 : vector<8x8xf32> to vector<8x8xbf16>
    %97 = arith.truncf %88 : vector<8x8xf32> to vector<8x8xbf16>
    %cst_69 = arith.constant dense<0.000000e+00> : vector<8x8xf32>
    %98 = tpu.matmul %96, %97, %cst_69 {dimension_numbers = #tpu.dot_dimension_numbers<[1], [1], [0], [0], [0, 0, 1, 0], [], []>} : vector<8x8xbf16>, vector<8x8xbf16>, vector<8x8xf32> -> vector<8x8xf32>
    %cst_70 = arith.constant 0.353553385 : f32
    %99 = vector.broadcast %cst_70 : f32 to vector<8x8xf32>
    %100 = arith.mulf %98, %99 : vector<8x8xf32>
    %cst_71 = arith.constant dense<0xFF800000> : vector<8xf32>
    %101 = vector.multi_reduction <maximumf>, %100, %cst_71 [1] : vector<8x8xf32> to vector<8xf32>
    %102 = vector.shape_cast %101 : vector<8xf32> to vector<8x1xf32>
    %103 = vector.broadcast %102 : vector<8x1xf32> to vector<8x8xf32>
    %104 = arith.subf %100, %103 : vector<8x8xf32>
    %105 = math.exp %104 : vector<8x8xf32>
    %cst_72 = arith.constant dense<0.000000e+00> : vector<8xf32>
    %106 = vector.multi_reduction <add>, %105, %cst_72 [1] : vector<8x8xf32> to vector<8xf32>
    %107 = vector.shape_cast %106 : vector<8xf32> to vector<8x1xf32>
    %108 = tpu.reciprocal %107 : vector<8x1xf32> -> vector<8x1xf32>
    %109 = vector.broadcast %108 : vector<8x1xf32> to vector<8x8xf32>
    %110 = arith.mulf %105, %109 : vector<8x8xf32>
    %111 = arith.mulf %2, %110 : vector<8x8xf32>
    %112 = vector.shape_cast %111 : vector<8x8xf32> to vector<1x8x8xf32>
    %cst_73 = arith.constant dense<0.000000e+00> : vector<1xf32>
    %113 = vector.multi_reduction <add>, %112, %cst_73 [1, 2] : vector<1x8x8xf32> to vector<1xf32>
    %114 = vector.shape_cast %113 : vector<1xf32> to vector<1x1x1xf32>
    %115 = vector.extract %114[0, 0, 0] : f32 from vector<1x1x1xf32>
    %cst_74 = arith.constant 1.562500e-02 : f32
    %116 = arith.mulf %115, %cst_74 : f32
    %117 = arith.mulf %111, %111 : vector<8x8xf32>
    %118 = vector.shape_cast %117 : vector<8x8xf32> to vector<1x8x8xf32>
    %cst_75 = arith.constant dense<0.000000e+00> : vector<1xf32>
    %119 = vector.multi_reduction <add>, %118, %cst_75 [1, 2] : vector<1x8x8xf32> to vector<1xf32>
    %120 = vector.shape_cast %119 : vector<1xf32> to vector<1x1x1xf32>
    %121 = vector.extract %120[0, 0, 0] : f32 from vector<1x1x1xf32>
    %cst_76 = arith.constant 1.562500e-02 : f32
    %122 = arith.mulf %121, %cst_76 : f32
    %123 = arith.mulf %116, %116 : f32
    %124 = arith.subf %122, %123 : f32
    %125 = vector.broadcast %116 : f32 to vector<8x8xf32>
    %126 = arith.subf %111, %125 : vector<8x8xf32>
    %cst_77 = arith.constant 9.99999974E-6 : f32
    %127 = arith.addf %124, %cst_77 : f32
    %128 = math.rsqrt %127 : f32
    %129 = vector.broadcast %128 : f32 to vector<8x8xf32>
    %130 = arith.mulf %126, %129 : vector<8x8xf32>
    %131 = arith.mulf %130, %3 : vector<8x8xf32>
    %132 = arith.addf %131, %4 : vector<8x8xf32>
    %133 = arith.truncf %132 : vector<8x8xf32> to vector<8x8xbf16>
    %134 = arith.truncf %95 : vector<8x8xf32> to vector<8x8xbf16>
    %cst_78 = arith.constant dense<0.000000e+00> : vector<8x8xf32>
    %135 = tpu.matmul %133, %134, %cst_78 {dimension_numbers = #tpu.dot_dimension_numbers<[1], [0], [0], [1], [0, 0, 1, 1], [], []>} : vector<8x8xbf16>, vector<8x8xbf16>, vector<8x8xf32> -> vector<8x8xf32>
    %c0_79 = arith.constant 0 : index
    %c0_80 = arith.constant 0 : index
    %136 = vector.load %arg14[%c0_79, %c0_80] : memref<8x32xf32, #tpu.memory_space<vmem>>, vector<8x32xf32>
    %137 = arith.truncf %135 : vector<8x8xf32> to vector<8x8xbf16>
    %c1_81 = arith.constant 1 : index
    %c0_82 = arith.constant 0 : index
    %c0_83 = arith.constant 0 : index
    %138 = vector.load %arg8[%c1_81, %c0_82, %c0_83] : memref<4x8x32xbf16, #tpu.memory_space<vmem>>, vector<1x8x32xbf16>
    %139 = vector.shape_cast %138 : vector<1x8x32xbf16> to vector<8x32xbf16>
    %cst_84 = arith.constant dense<0.000000e+00> : vector<8x32xf32>
    %140 = tpu.matmul %137, %139, %cst_84 {dimension_numbers = #tpu.dot_dimension_numbers<[1], [0], [0], [1], [0, 0, 1, 1], [], []>} : vector<8x8xbf16>, vector<8x32xbf16>, vector<8x32xf32> -> vector<8x32xf32>
    %141 = arith.addf %136, %140 : vector<8x32xf32>
    %c0_85 = arith.constant 0 : index
    %c0_86 = arith.constant 0 : index
    %142 = vector.load %arg14[%c0_85, %c0_86] : memref<8x32xf32, #tpu.memory_space<vmem>>, vector<8x32xf32>
    tpu.vector_store %arg14[%c0_85, %c0_86], %141 {strides = array<i32>} : memref<8x32xf32, #tpu.memory_space<vmem>>, vector<8x32xf32>,
    %c2 = arith.constant 2 : index
    %c0_87 = arith.constant 0 : index
    %c0_88 = arith.constant 0 : index
    %143 = vector.load %arg2[%c2, %c0_87, %c0_88] : memref<4x32x8xbf16, #tpu.memory_space<vmem>>, vector<1x32x8xbf16>
    %144 = vector.shape_cast %143 : vector<1x32x8xbf16> to vector<32x8xbf16>
    %cst_89 = arith.constant dense<0.000000e+00> : vector<8x8xf32>
    %145 = tpu.matmul %1, %144, %cst_89 {dimension_numbers = #tpu.dot_dimension_numbers<[1], [0], [0], [1], [0, 0, 1, 1], [], []>} : vector<8x32xbf16>, vector<32x8xbf16>, vector<8x8xf32> -> vector<8x8xf32>
    %c2_90 = arith.constant 2 : index
    %c0_91 = arith.constant 0 : index
    %c0_92 = arith.constant 0 : index
    %146 = vector.load %arg5[%c2_90, %c0_91, %c0_92] : memref<4x1x8xf32, #tpu.memory_space<vmem>>, vector<1x1x8xf32>
    %147 = vector.shape_cast %146 : vector<1x1x8xf32> to vector<1x8xf32>
    %148 = vector.broadcast %147 : vector<1x8xf32> to vector<8x8xf32>
    %149 = arith.addf %145, %148 : vector<8x8xf32>
    %c2_93 = arith.constant 2 : index
    %c0_94 = arith.constant 0 : index
    %c0_95 = arith.constant 0 : index
    %150 = vector.load %arg3[%c2_93, %c0_94, %c0_95] : memref<4x32x8xbf16, #tpu.memory_space<vmem>>, vector<1x32x8xbf16>
    %151 = vector.shape_cast %150 : vector<1x32x8xbf16> to vector<32x8xbf16>
    %cst_96 = arith.constant dense<0.000000e+00> : vector<8x8xf32>
    %152 = tpu.matmul %1, %151, %cst_96 {dimension_numbers = #tpu.dot_dimension_numbers<[1], [0], [0], [1], [0, 0, 1, 1], [], []>} : vector<8x32xbf16>, vector<32x8xbf16>, vector<8x8xf32> -> vector<8x8xf32>
    %c2_97 = arith.constant 2 : index
    %c0_98 = arith.constant 0 : index
    %c0_99 = arith.constant 0 : index
    %153 = vector.load %arg6[%c2_97, %c0_98, %c0_99] : memref<4x1x8xf32, #tpu.memory_space<vmem>>, vector<1x1x8xf32>
    %154 = vector.shape_cast %153 : vector<1x1x8xf32> to vector<1x8xf32>
    %155 = vector.broadcast %154 : vector<1x8xf32> to vector<8x8xf32>
    %156 = arith.addf %152, %155 : vector<8x8xf32>
    %c2_100 = arith.constant 2 : index
    %c0_101 = arith.constant 0 : index
    %c0_102 = arith.constant 0 : index
    %157 = vector.load %arg4[%c2_100, %c0_101, %c0_102] : memref<4x32x8xbf16, #tpu.memory_space<vmem>>, vector<1x32x8xbf16>
    %158 = vector.shape_cast %157 : vector<1x32x8xbf16> to vector<32x8xbf16>
    %cst_103 = arith.constant dense<0.000000e+00> : vector<8x8xf32>
    %159 = tpu.matmul %1, %158, %cst_103 {dimension_numbers = #tpu.dot_dimension_numbers<[1], [0], [0], [1], [0, 0, 1, 1], [], []>} : vector<8x32xbf16>, vector<32x8xbf16>, vector<8x8xf32> -> vector<8x8xf32>
    %c2_104 = arith.constant 2 : index
    %c0_105 = arith.constant 0 : index
    %c0_106 = arith.constant 0 : index
    %160 = vector.load %arg7[%c2_104, %c0_105, %c0_106] : memref<4x1x8xf32, #tpu.memory_space<vmem>>, vector<1x1x8xf32>
    %161 = vector.shape_cast %160 : vector<1x1x8xf32> to vector<1x8xf32>
    %162 = vector.broadcast %161 : vector<1x8xf32> to vector<8x8xf32>
    %163 = arith.addf %159, %162 : vector<8x8xf32>
    %164 = arith.truncf %149 : vector<8x8xf32> to vector<8x8xbf16>
    %165 = arith.truncf %156 : vector<8x8xf32> to vector<8x8xbf16>
    %cst_107 = arith.constant dense<0.000000e+00> : vector<8x8xf32>
    %166 = tpu.matmul %164, %165, %cst_107 {dimension_numbers = #tpu.dot_dimension_numbers<[1], [1], [0], [0], [0, 0, 1, 0], [], []>} : vector<8x8xbf16>, vector<8x8xbf16>, vector<8x8xf32> -> vector<8x8xf32>
    %cst_108 = arith.constant 0.353553385 : f32
    %167 = vector.broadcast %cst_108 : f32 to vector<8x8xf32>
    %168 = arith.mulf %166, %167 : vector<8x8xf32>
    %cst_109 = arith.constant dense<0xFF800000> : vector<8xf32>
    %169 = vector.multi_reduction <maximumf>, %168, %cst_109 [1] : vector<8x8xf32> to vector<8xf32>
    %170 = vector.shape_cast %169 : vector<8xf32> to vector<8x1xf32>
    %171 = vector.broadcast %170 : vector<8x1xf32> to vector<8x8xf32>
    %172 = arith.subf %168, %171 : vector<8x8xf32>
    %173 = math.exp %172 : vector<8x8xf32>
    %cst_110 = arith.constant dense<0.000000e+00> : vector<8xf32>
    %174 = vector.multi_reduction <add>, %173, %cst_110 [1] : vector<8x8xf32> to vector<8xf32>
    %175 = vector.shape_cast %174 : vector<8xf32> to vector<8x1xf32>
    %176 = tpu.reciprocal %175 : vector<8x1xf32> -> vector<8x1xf32>
    %177 = vector.broadcast %176 : vector<8x1xf32> to vector<8x8xf32>
    %178 = arith.mulf %173, %177 : vector<8x8xf32>
    %179 = arith.mulf %2, %178 : vector<8x8xf32>
    %180 = vector.shape_cast %179 : vector<8x8xf32> to vector<1x8x8xf32>
    %cst_111 = arith.constant dense<0.000000e+00> : vector<1xf32>
    %181 = vector.multi_reduction <add>, %180, %cst_111 [1, 2] : vector<1x8x8xf32> to vector<1xf32>
    %182 = vector.shape_cast %181 : vector<1xf32> to vector<1x1x1xf32>
    %183 = vector.extract %182[0, 0, 0] : f32 from vector<1x1x1xf32>
    %cst_112 = arith.constant 1.562500e-02 : f32
    %184 = arith.mulf %183, %cst_112 : f32
    %185 = arith.mulf %179, %179 : vector<8x8xf32>
    %186 = vector.shape_cast %185 : vector<8x8xf32> to vector<1x8x8xf32>
    %cst_113 = arith.constant dense<0.000000e+00> : vector<1xf32>
    %187 = vector.multi_reduction <add>, %186, %cst_113 [1, 2] : vector<1x8x8xf32> to vector<1xf32>
    %188 = vector.shape_cast %187 : vector<1xf32> to vector<1x1x1xf32>
    %189 = vector.extract %188[0, 0, 0] : f32 from vector<1x1x1xf32>
    %cst_114 = arith.constant 1.562500e-02 : f32
    %190 = arith.mulf %189, %cst_114 : f32
    %191 = arith.mulf %184, %184 : f32
    %192 = arith.subf %190, %191 : f32
    %193 = vector.broadcast %184 : f32 to vector<8x8xf32>
    %194 = arith.subf %179, %193 : vector<8x8xf32>
    %cst_115 = arith.constant 9.99999974E-6 : f32
    %195 = arith.addf %192, %cst_115 : f32
    %196 = math.rsqrt %195 : f32
    %197 = vector.broadcast %196 : f32 to vector<8x8xf32>
    %198 = arith.mulf %194, %197 : vector<8x8xf32>
    %199 = arith.mulf %198, %3 : vector<8x8xf32>
    %200 = arith.addf %199, %4 : vector<8x8xf32>
    %201 = arith.truncf %200 : vector<8x8xf32> to vector<8x8xbf16>
    %202 = arith.truncf %163 : vector<8x8xf32> to vector<8x8xbf16>
    %cst_116 = arith.constant dense<0.000000e+00> : vector<8x8xf32>
    %203 = tpu.matmul %201, %202, %cst_116 {dimension_numbers = #tpu.dot_dimension_numbers<[1], [0], [0], [1], [0, 0, 1, 1], [], []>} : vector<8x8xbf16>, vector<8x8xbf16>, vector<8x8xf32> -> vector<8x8xf32>
    %c0_117 = arith.constant 0 : index
    %c0_118 = arith.constant 0 : index
    %204 = vector.load %arg14[%c0_117, %c0_118] : memref<8x32xf32, #tpu.memory_space<vmem>>, vector<8x32xf32>
    %205 = arith.truncf %203 : vector<8x8xf32> to vector<8x8xbf16>
    %c2_119 = arith.constant 2 : index
    %c0_120 = arith.constant 0 : index
    %c0_121 = arith.constant 0 : index
    %206 = vector.load %arg8[%c2_119, %c0_120, %c0_121] : memref<4x8x32xbf16, #tpu.memory_space<vmem>>, vector<1x8x32xbf16>
    %207 = vector.shape_cast %206 : vector<1x8x32xbf16> to vector<8x32xbf16>
    %cst_122 = arith.constant dense<0.000000e+00> : vector<8x32xf32>
    %208 = tpu.matmul %205, %207, %cst_122 {dimension_numbers = #tpu.dot_dimension_numbers<[1], [0], [0], [1], [0, 0, 1, 1], [], []>} : vector<8x8xbf16>, vector<8x32xbf16>, vector<8x32xf32> -> vector<8x32xf32>
    %209 = arith.addf %204, %208 : vector<8x32xf32>
    %c0_123 = arith.constant 0 : index
    %c0_124 = arith.constant 0 : index
    %210 = vector.load %arg14[%c0_123, %c0_124] : memref<8x32xf32, #tpu.memory_space<vmem>>, vector<8x32xf32>
    tpu.vector_store %arg14[%c0_123, %c0_124], %209 {strides = array<i32>} : memref<8x32xf32, #tpu.memory_space<vmem>>, vector<8x32xf32>,
    %c3 = arith.constant 3 : index
    %c0_125 = arith.constant 0 : index
    %c0_126 = arith.constant 0 : index
    %211 = vector.load %arg2[%c3, %c0_125, %c0_126] : memref<4x32x8xbf16, #tpu.memory_space<vmem>>, vector<1x32x8xbf16>
    %212 = vector.shape_cast %211 : vector<1x32x8xbf16> to vector<32x8xbf16>
    %cst_127 = arith.constant dense<0.000000e+00> : vector<8x8xf32>
    %213 = tpu.matmul %1, %212, %cst_127 {dimension_numbers = #tpu.dot_dimension_numbers<[1], [0], [0], [1], [0, 0, 1, 1], [], []>} : vector<8x32xbf16>, vector<32x8xbf16>, vector<8x8xf32> -> vector<8x8xf32>
    %c3_128 = arith.constant 3 : index
    %c0_129 = arith.constant 0 : index
    %c0_130 = arith.constant 0 : index
    %214 = vector.load %arg5[%c3_128, %c0_129, %c0_130] : memref<4x1x8xf32, #tpu.memory_space<vmem>>, vector<1x1x8xf32>
    %215 = vector.shape_cast %214 : vector<1x1x8xf32> to vector<1x8xf32>
    %216 = vector.broadcast %215 : vector<1x8xf32> to vector<8x8xf32>
    %217 = arith.addf %213, %216 : vector<8x8xf32>
    %c3_131 = arith.constant 3 : index
    %c0_132 = arith.constant 0 : index
    %c0_133 = arith.constant 0 : index
    %218 = vector.load %arg3[%c3_131, %c0_132, %c0_133] : memref<4x32x8xbf16, #tpu.memory_space<vmem>>, vector<1x32x8xbf16>
    %219 = vector.shape_cast %218 : vector<1x32x8xbf16> to vector<32x8xbf16>
    %cst_134 = arith.constant dense<0.000000e+00> : vector<8x8xf32>
    %220 = tpu.matmul %1, %219, %cst_134 {dimension_numbers = #tpu.dot_dimension_numbers<[1], [0], [0], [1], [0, 0, 1, 1], [], []>} : vector<8x32xbf16>, vector<32x8xbf16>, vector<8x8xf32> -> vector<8x8xf32>
    %c3_135 = arith.constant 3 : index
    %c0_136 = arith.constant 0 : index
    %c0_137 = arith.constant 0 : index
    %221 = vector.load %arg6[%c3_135, %c0_136, %c0_137] : memref<4x1x8xf32, #tpu.memory_space<vmem>>, vector<1x1x8xf32>
    %222 = vector.shape_cast %221 : vector<1x1x8xf32> to vector<1x8xf32>
    %223 = vector.broadcast %222 : vector<1x8xf32> to vector<8x8xf32>
    %224 = arith.addf %220, %223 : vector<8x8xf32>
    %c3_138 = arith.constant 3 : index
    %c0_139 = arith.constant 0 : index
    %c0_140 = arith.constant 0 : index
    %225 = vector.load %arg4[%c3_138, %c0_139, %c0_140] : memref<4x32x8xbf16, #tpu.memory_space<vmem>>, vector<1x32x8xbf16>
    %226 = vector.shape_cast %225 : vector<1x32x8xbf16> to vector<32x8xbf16>
    %cst_141 = arith.constant dense<0.000000e+00> : vector<8x8xf32>
    %227 = tpu.matmul %1, %226, %cst_141 {dimension_numbers = #tpu.dot_dimension_numbers<[1], [0], [0], [1], [0, 0, 1, 1], [], []>} : vector<8x32xbf16>, vector<32x8xbf16>, vector<8x8xf32> -> vector<8x8xf32>
    %c3_142 = arith.constant 3 : index
    %c0_143 = arith.constant 0 : index
    %c0_144 = arith.constant 0 : index
    %228 = vector.load %arg7[%c3_142, %c0_143, %c0_144] : memref<4x1x8xf32, #tpu.memory_space<vmem>>, vector<1x1x8xf32>
    %229 = vector.shape_cast %228 : vector<1x1x8xf32> to vector<1x8xf32>
    %230 = vector.broadcast %229 : vector<1x8xf32> to vector<8x8xf32>
    %231 = arith.addf %227, %230 : vector<8x8xf32>
    %232 = arith.truncf %217 : vector<8x8xf32> to vector<8x8xbf16>
    %233 = arith.truncf %224 : vector<8x8xf32> to vector<8x8xbf16>
    %cst_145 = arith.constant dense<0.000000e+00> : vector<8x8xf32>
    %234 = tpu.matmul %232, %233, %cst_145 {dimension_numbers = #tpu.dot_dimension_numbers<[1], [1], [0], [0], [0, 0, 1, 0], [], []>} : vector<8x8xbf16>, vector<8x8xbf16>, vector<8x8xf32> -> vector<8x8xf32>
    %cst_146 = arith.constant 0.353553385 : f32
    %235 = vector.broadcast %cst_146 : f32 to vector<8x8xf32>
    %236 = arith.mulf %234, %235 : vector<8x8xf32>
    %cst_147 = arith.constant dense<0xFF800000> : vector<8xf32>
    %237 = vector.multi_reduction <maximumf>, %236, %cst_147 [1] : vector<8x8xf32> to vector<8xf32>
    %238 = vector.shape_cast %237 : vector<8xf32> to vector<8x1xf32>
    %239 = vector.broadcast %238 : vector<8x1xf32> to vector<8x8xf32>
    %240 = arith.subf %236, %239 : vector<8x8xf32>
    %241 = math.exp %240 : vector<8x8xf32>
    %cst_148 = arith.constant dense<0.000000e+00> : vector<8xf32>
    %242 = vector.multi_reduction <add>, %241, %cst_148 [1] : vector<8x8xf32> to vector<8xf32>
    %243 = vector.shape_cast %242 : vector<8xf32> to vector<8x1xf32>
    %244 = tpu.reciprocal %243 : vector<8x1xf32> -> vector<8x1xf32>
    %245 = vector.broadcast %244 : vector<8x1xf32> to vector<8x8xf32>
    %246 = arith.mulf %241, %245 : vector<8x8xf32>
    %247 = arith.mulf %2, %246 : vector<8x8xf32>
    %248 = vector.shape_cast %247 : vector<8x8xf32> to vector<1x8x8xf32>
    %cst_149 = arith.constant dense<0.000000e+00> : vector<1xf32>
    %249 = vector.multi_reduction <add>, %248, %cst_149 [1, 2] : vector<1x8x8xf32> to vector<1xf32>
    %250 = vector.shape_cast %249 : vector<1xf32> to vector<1x1x1xf32>
    %251 = vector.extract %250[0, 0, 0] : f32 from vector<1x1x1xf32>
    %cst_150 = arith.constant 1.562500e-02 : f32
    %252 = arith.mulf %251, %cst_150 : f32
    %253 = arith.mulf %247, %247 : vector<8x8xf32>
    %254 = vector.shape_cast %253 : vector<8x8xf32> to vector<1x8x8xf32>
    %cst_151 = arith.constant dense<0.000000e+00> : vector<1xf32>
    %255 = vector.multi_reduction <add>, %254, %cst_151 [1, 2] : vector<1x8x8xf32> to vector<1xf32>
    %256 = vector.shape_cast %255 : vector<1xf32> to vector<1x1x1xf32>
    %257 = vector.extract %256[0, 0, 0] : f32 from vector<1x1x1xf32>
    %cst_152 = arith.constant 1.562500e-02 : f32
    %258 = arith.mulf %257, %cst_152 : f32
    %259 = arith.mulf %252, %252 : f32
    %260 = arith.subf %258, %259 : f32
    %261 = vector.broadcast %252 : f32 to vector<8x8xf32>
    %262 = arith.subf %247, %261 : vector<8x8xf32>
    %cst_153 = arith.constant 9.99999974E-6 : f32
    %263 = arith.addf %260, %cst_153 : f32
    %264 = math.rsqrt %263 : f32
    %265 = vector.broadcast %264 : f32 to vector<8x8xf32>
    %266 = arith.mulf %262, %265 : vector<8x8xf32>
    %267 = arith.mulf %266, %3 : vector<8x8xf32>
    %268 = arith.addf %267, %4 : vector<8x8xf32>
    %269 = arith.truncf %268 : vector<8x8xf32> to vector<8x8xbf16>
    %270 = arith.truncf %231 : vector<8x8xf32> to vector<8x8xbf16>
    %cst_154 = arith.constant dense<0.000000e+00> : vector<8x8xf32>
    %271 = tpu.matmul %269, %270, %cst_154 {dimension_numbers = #tpu.dot_dimension_numbers<[1], [0], [0], [1], [0, 0, 1, 1], [], []>} : vector<8x8xbf16>, vector<8x8xbf16>, vector<8x8xf32> -> vector<8x8xf32>
    %c0_155 = arith.constant 0 : index
    %c0_156 = arith.constant 0 : index
    %272 = vector.load %arg14[%c0_155, %c0_156] : memref<8x32xf32, #tpu.memory_space<vmem>>, vector<8x32xf32>
    %273 = arith.truncf %271 : vector<8x8xf32> to vector<8x8xbf16>
    %c3_157 = arith.constant 3 : index
    %c0_158 = arith.constant 0 : index
    %c0_159 = arith.constant 0 : index
    %274 = vector.load %arg8[%c3_157, %c0_158, %c0_159] : memref<4x8x32xbf16, #tpu.memory_space<vmem>>, vector<1x8x32xbf16>
    %275 = vector.shape_cast %274 : vector<1x8x32xbf16> to vector<8x32xbf16>
    %cst_160 = arith.constant dense<0.000000e+00> : vector<8x32xf32>
    %276 = tpu.matmul %273, %275, %cst_160 {dimension_numbers = #tpu.dot_dimension_numbers<[1], [0], [0], [1], [0, 0, 1, 1], [], []>} : vector<8x8xbf16>, vector<8x32xbf16>, vector<8x32xf32> -> vector<8x32xf32>
    %277 = arith.addf %272, %276 : vector<8x32xf32>
    %c0_161 = arith.constant 0 : index
    %c0_162 = arith.constant 0 : index
    %278 = vector.load %arg14[%c0_161, %c0_162] : memref<8x32xf32, #tpu.memory_space<vmem>>, vector<8x32xf32>
    tpu.vector_store %arg14[%c0_161, %c0_162], %277 {strides = array<i32>} : memref<8x32xf32, #tpu.memory_space<vmem>>, vector<8x32xf32>,
    %c0_163 = arith.constant 0 : index
    %c0_164 = arith.constant 0 : index
    %279 = vector.load %arg14[%c0_163, %c0_164] : memref<8x32xf32, #tpu.memory_space<vmem>>, vector<8x32xf32>
    %c0_165 = arith.constant 0 : index
    %c0_166 = arith.constant 0 : index
    %280 = vector.load %arg9[%c0_165, %c0_166] : memref<1x32xf32, #tpu.memory_space<vmem>>, vector<1x32xf32>
    %281 = vector.broadcast %280 : vector<1x32xf32> to vector<8x32xf32>
    %282 = arith.addf %279, %281 : vector<8x32xf32>
    %c0_167 = arith.constant 0 : index
    %c0_168 = arith.constant 0 : index
    %c0_169 = arith.constant 0 : index
    %283 = vector.load %arg13[%c0_167, %c0_168, %c0_169] : memref<1x8x32xf32, #tpu.memory_space<vmem>>, vector<1x8x32xf32>
    %284 = vector.shape_cast %283 : vector<1x8x32xf32> to vector<8x32xf32>
    %285 = vector.shape_cast %282 : vector<8x32xf32> to vector<1x8x32xf32>
    tpu.vector_store %arg13[%c0_167, %c0_168, %c0_169], %285 {strides = array<i32>} : memref<1x8x32xf32, #tpu.memory_space<vmem>>, vector<1x8x32xf32>,
    return
  }
  func.func @transform_0(%arg0: i32) -> (i32, i32, i32) {
    %c0_i32 = arith.constant 0 : i32
    %c0_i32_0 = arith.constant 0 : i32
    %c0_i32_1 = arith.constant 0 : i32
    return %arg0, %c0_i32, %c0_i32_0 : i32, i32, i32
  }
  func.func @transform_1(%arg0: i32) -> (i32, i32, i32) {
    %c0_i32 = arith.constant 0 : i32
    %c0_i32_0 = arith.constant 0 : i32
    %c0_i32_1 = arith.constant 0 : i32
    %c0_i32_2 = arith.constant 0 : i32
    return %c0_i32, %c0_i32_0, %c0_i32_1 : i32, i32, i32
  }
  func.func @transform_2(%arg0: i32) -> (i32, i32, i32) {
    %c0_i32 = arith.constant 0 : i32
    %c0_i32_0 = arith.constant 0 : i32
    %c0_i32_1 = arith.constant 0 : i32
    %c0_i32_2 = arith.constant 0 : i32
    return %c0_i32, %c0_i32_0, %c0_i32_1 : i32, i32, i32
  }
  func.func @transform_3(%arg0: i32) -> (i32, i32, i32) {
    %c0_i32 = arith.constant 0 : i32
    %c0_i32_0 = arith.constant 0 : i32
    %c0_i32_1 = arith.constant 0 : i32
    %c0_i32_2 = arith.constant 0 : i32
    return %c0_i32, %c0_i32_0, %c0_i32_1 : i32, i32, i32
  }
  func.func @transform_4(%arg0: i32) -> (i32, i32, i32) {
    %c0_i32 = arith.constant 0 : i32
    %c0_i32_0 = arith.constant 0 : i32
    %c0_i32_1 = arith.constant 0 : i32
    %c0_i32_2 = arith.constant 0 : i32
    return %c0_i32, %c0_i32_0, %c0_i32_1 : i32, i32, i32
  }
  func.func @transform_5(%arg0: i32) -> (i32, i32, i32) {
    %c0_i32 = arith.constant 0 : i32
    %c0_i32_0 = arith.constant 0 : i32
    %c0_i32_1 = arith.constant 0 : i32
    %c0_i32_2 = arith.constant 0 : i32
    return %c0_i32, %c0_i32_0, %c0_i32_1 : i32, i32, i32
  }
  func.func @transform_6(%arg0: i32) -> (i32, i32, i32) {
    %c0_i32 = arith.constant 0 : i32
    %c0_i32_0 = arith.constant 0 : i32
    %c0_i32_1 = arith.constant 0 : i32
    %c0_i32_2 = arith.constant 0 : i32
    return %c0_i32, %c0_i32_0, %c0_i32_1 : i32, i32, i32
  }
  func.func @transform_7(%arg0: i32) -> (i32, i32, i32) {
    %c0_i32 = arith.constant 0 : i32
    %c0_i32_0 = arith.constant 0 : i32
    %c0_i32_1 = arith.constant 0 : i32
    %c0_i32_2 = arith.constant 0 : i32
    return %c0_i32, %c0_i32_0, %c0_i32_1 : i32, i32, i32
  }
  func.func @transform_8(%arg0: i32) -> (i32, i32) {
    %c0_i32 = arith.constant 0 : i32
    %c0_i32_0 = arith.constant 0 : i32
    %c0_i32_1 = arith.constant 0 : i32
    return %c0_i32, %c0_i32_0 : i32, i32
  }
  func.func @transform_9(%arg0: i32) -> (i32, i32) {
    %c0_i32 = arith.constant 0 : i32
    %c0_i32_0 = arith.constant 0 : i32
    %c0_i32_1 = arith.constant 0 : i32
    return %c0_i32, %c0_i32_0 : i32, i32
  }
  func.func @transform_10(%arg0: i32) -> (i32, i32) {
    %c0_i32 = arith.constant 0 : i32
    %c0_i32_0 = arith.constant 0 : i32
    %c0_i32_1 = arith.constant 0 : i32
    return %c0_i32, %c0_i32_0 : i32, i32
  }
  func.func @transform_11(%arg0: i32) -> (i32, i32) {
    %c0_i32 = arith.constant 0 : i32
    %c0_i32_0 = arith.constant 0 : i32
    %c0_i32_1 = arith.constant 0 : i32
    return %c0_i32, %c0_i32_0 : i32, i32
  }
  func.func @transform_12(%arg0: i32) -> (i32, i32, i32) {
    %c0_i32 = arith.constant 0 : i32
    %c0_i32_0 = arith.constant 0 : i32
    %c0_i32_1 = arith.constant 0 : i32
    return %arg0, %c0_i32, %c0_i32_0 : i32, i32, i32
  }
}

</mosaic_0001>

<llo_original>
// kernel: tpu_custom_call.1
$region0: #{tpu_custom_call.1}
  #allocation0 [shape = 'u32[]', space=smem, size = 0x4, offset = 0x4, fixed_abs, tag = 'smem constant byte address 0x4 - core index']
  #allocation1 [shape = 'u32[144,128]{1,0:T(1,128)}', space=vmem, size = 0x12000, scoped, tag = 'internal scratch']
  #allocation2 [shape = 'f32[8,32]{1,0:T(8,128)}', space=vmem, size = 0x1000, scoped, tag = 'scratch operand']
  %s0 = inlined_call_operand.vmem [shape: bf16[2,8,32], index: 0, kind: input, shape index: {}]
  %s1 = inlined_call_operand.vmem [shape: bf16[4,32,8], index: 1, kind: input, shape index: {}]
  %s2 = inlined_call_operand.vmem [shape: bf16[4,32,8], index: 2, kind: input, shape index: {}]
  %s3 = inlined_call_operand.vmem [shape: bf16[4,32,8], index: 3, kind: input, shape index: {}]
  %s4 = inlined_call_operand.vmem [shape: f32[4,1,8], index: 4, kind: input, shape index: {}]
  %s5 = inlined_call_operand.vmem [shape: f32[4,1,8], index: 5, kind: input, shape index: {}]
  %s6 = inlined_call_operand.vmem [shape: f32[4,1,8], index: 6, kind: input, shape index: {}]
  %s7 = inlined_call_operand.vmem [shape: bf16[4,8,32], index: 7, kind: input, shape index: {}]
  %s8 = inlined_call_operand.vmem [shape: f32[1,32], index: 8, kind: input, shape index: {}]
  %s9 = inlined_call_operand.vmem [shape: f32[8,8], index: 9, kind: input, shape index: {}]
  %s10 = inlined_call_operand.vmem [shape: f32[8,8], index: 10, kind: input, shape index: {}]
  %s11 = inlined_call_operand.vmem [shape: f32[8,8], index: 11, kind: input, shape index: {}]
  %s12 = inlined_call_operand.hbm [shape: f32[2,8,32], index: 12, kind: output, shape index: {}]
  %s13 = sld [smem:[#allocation0]]
  $region81: #{tpu_custom_call.1} parent=0
    _
  %s15 = ssub.s32 1, %s13
  %s16 = scalar_select 0, %s15, %s13
  $region1: #{tpu_custom_call.1} parent=0
    #allocation3 [shape = 'u8[8192]{0}', space=vmem, size = 0x2000, scoped, tag = 'output window, operand 0']
    #allocation4 [shape = 's32[2]{0}', space=sflag, size = 0x8, scoped, tag = 'scoped memory for tpu_custom_call.1']
    %17 = vsyncpa [#allocation4], 0
    %s18 = scalar_lea.sflag [#allocation4], 1
    %19 = vsyncpa %s18, 0
    loop: start=0, step=1, limit=4
    $region2: #{tpu_custom_call.1} parent=1 // loop_pre_header
      _
    $region3: #{tpu_custom_call.1} parent=1 // loop_header
      %s21 = sphi 0, %s25
      %p22 = scmp.ge.s32.totalorder %s21, 4
      %s31 = sphi 0, %s33
      %s34 = sphi 0, %s31
      %s35 = sphi 0, %s34
      %s51 = sphi 0, %s35
      %s55 = sphi 0, %s55
      %s57 = sphi 0, %s55
      %s58 = sphi 0, %s57
      %s72 = sphi 0, %s58
      %s76 = sphi 0, %s76
      %s78 = sphi 0, %s76
      %s79 = sphi 0, %s78
      %s93 = sphi 0, %s79
      %s97 = sphi 0, %s97
      %s99 = sphi 0, %s97
      %s100 = sphi 0, %s99
      %s114 = sphi 0, %s100
      %s118 = sphi 0, %s118
      %s120 = sphi 0, %s118
      %s121 = sphi 0, %s120
      %s135 = sphi 0, %s121
      %s139 = sphi 0, %s139
      %s141 = sphi 0, %s139
      %s142 = sphi 0, %s141
      %s156 = sphi 0, %s142
      %s160 = sphi 0, %s160
      %s162 = sphi 0, %s160
      %s163 = sphi 0, %s162
      %s177 = sphi 0, %s163
      %s181 = sphi 0, %s181
      %s183 = sphi 0, %s181
      %s184 = sphi 0, %s183
      %s198 = sphi 0, %s184
      %s202 = sphi 0, %s202
      %s204 = sphi 0, %s202
      %s205 = sphi 0, %s204
      %s219 = sphi 0, %s205
      %s223 = sphi 0, %s223
      %s225 = sphi 0, %s223
      %s226 = sphi 0, %s225
      %s240 = sphi 0, %s226
      %s244 = sphi 0, %s244
      %s246 = sphi 0, %s244
      %s247 = sphi 0, %s246
      %s261 = sphi 0, %s247
      %s265 = sphi 0, %s265
      %s267 = sphi 0, %s265
      %s268 = sphi 0, %s267
      %s282 = sphi 0, %s268
      %s288 = sphi 0, %s290
      %s291 = sphi 0, %s288
      %s292 = sphi 0, %s291
      %s308 = sphi 0, %s292
    $region4: #{tpu_custom_call.1} parent=1 // loop_header_branch
      %24 = sbr.rel (%p22) target = $region8
    $region5: #{tpu_custom_call.1} parent=1 // loop_body
      %s26 = ssub.s32 %s21, 1
      %s27 = ssub.s32 %s21, 2
      %s28 = sadd.s32 %s21, 1
      %s29 = ssub.s32 %s21, %s28
      %p30 = scmp.eq.s32.totalorder %s29, 0
      %s32 = sadd.s32 %s31, 1
      %s33 = scalar_select %p30, %s31, %s32
      %p36 = pneg %p30
      %p37 = scmp.eq.s32.totalorder %s21, 1
      %p38 = por %p36, %p37
      %p39 = scmp.ne.s32.totalorder %s31, %s34
      %p40 = scmp.eq.s32.totalorder %s21, 0
      %p41 = por %p39, %p40
      %p42 = scmp.ne.s32.totalorder %s31, %s34
      %p43 = scmp.eq.s32.totalorder %s26, 1
      %p44 = por %p42, %p43
      %p45 = scmp.ne.s32.totalorder %s34, %s35
      %p46 = scmp.eq.s32.totalorder %s26, 0
      %p47 = por %p45, %p46
      %p48 = scmp.ne.s32.totalorder %s34, %s35
      %p49 = scmp.eq.s32.totalorder %s27, 1
      %p50 = por %p48, %p49
      %p52 = scmp.ne.s32.totalorder %s35, %s51
      %p53 = scmp.eq.s32.totalorder %s27, 0
      %p54 = por %p52, %p53
      %s56 = sadd.s32 %s55, 1
      %p59 = scmp.eq.s32.totalorder %s21, 1
      %p60 = scmp.ne.s32.totalorder %s55, %s57
      %p61 = scmp.eq.s32.totalorder %s21, 0
      %p62 = por %p60, %p61
      %p63 = scmp.ne.s32.totalorder %s55, %s57
      %p64 = scmp.eq.s32.totalorder %s26, 1
      %p65 = por %p63, %p64
      %p66 = scmp.ne.s32.totalorder %s57, %s58
      %p67 = scmp.eq.s32.totalorder %s26, 0
      %p68 = por %p66, %p67
      %p69 = scmp.ne.s32.totalorder %s57, %s58
      %p70 = scmp.eq.s32.totalorder %s27, 1
      %p71 = por %p69, %p70
      %p73 = scmp.ne.s32.totalorder %s58, %s72
      %p74 = scmp.eq.s32.totalorder %s27, 0
      %p75 = por %p73, %p74
      %s77 = sadd.s32 %s76, 1
      %p80 = scmp.eq.s32.totalorder %s21, 1
      %p81 = scmp.ne.s32.totalorder %s76, %s78
      %p82 = scmp.eq.s32.totalorder %s21, 0
      %p83 = por %p81, %p82
      %p84 = scmp.ne.s32.totalorder %s76, %s78
      %p85 = scmp.eq.s32.totalorder %s26, 1
      %p86 = por %p84, %p85
      %p87 = scmp.ne.s32.totalorder %s78, %s79
      %p88 = scmp.eq.s32.totalorder %s26, 0
      %p89 = por %p87, %p88
      %p90 = scmp.ne.s32.totalorder %s78, %s79
      %p91 = scmp.eq.s32.totalorder %s27, 1
      %p92 = por %p90, %p91
      %p94 = scmp.ne.s32.totalorder %s79, %s93
      %p95 = scmp.eq.s32.totalorder %s27, 0
      %p96 = por %p94, %p95
      %s98 = sadd.s32 %s97, 1
      %p101 = scmp.eq.s32.totalorder %s21, 1
      %p102 = scmp.ne.s32.totalorder %s97, %s99
      %p103 = scmp.eq.s32.totalorder %s21, 0
      %p104 = por %p102, %p103
      %p105 = scmp.ne.s32.totalorder %s97, %s99
      %p106 = scmp.eq.s32.totalorder %s26, 1
      %p107 = por %p105, %p106
      %p108 = scmp.ne.s32.totalorder %s99, %s100
      %p109 = scmp.eq.s32.totalorder %s26, 0
      %p110 = por %p108, %p109
      %p111 = scmp.ne.s32.totalorder %s99, %s100
      %p112 = scmp.eq.s32.totalorder %s27, 1
      %p113 = por %p111, %p112
      %p115 = scmp.ne.s32.totalorder %s100, %s114
      %p116 = scmp.eq.s32.totalorder %s27, 0
      %p117 = por %p115, %p116
      %s119 = sadd.s32 %s118, 1
      %p122 = scmp.eq.s32.totalorder %s21, 1
      %p123 = scmp.ne.s32.totalorder %s118, %s120
      %p124 = scmp.eq.s32.totalorder %s21, 0
      %p125 = por %p123, %p124
      %p126 = scmp.ne.s32.totalorder %s118, %s120
      %p127 = scmp.eq.s32.totalorder %s26, 1
      %p128 = por %p126, %p127
      %p129 = scmp.ne.s32.totalorder %s120, %s121
      %p130 = scmp.eq.s32.totalorder %s26, 0
      %p131 = por %p129, %p130
      %p132 = scmp.ne.s32.totalorder %s120, %s121
      %p133 = scmp.eq.s32.totalorder %s27, 1
      %p134 = por %p132, %p133
      %p136 = scmp.ne.s32.totalorder %s121, %s135
      %p137 = scmp.eq.s32.totalorder %s27, 0
      %p138 = por %p136, %p137
      %s140 = sadd.s32 %s139, 1
      %p143 = scmp.eq.s32.totalorder %s21, 1
      %p144 = scmp.ne.s32.totalorder %s139, %s141
      %p145 = scmp.eq.s32.totalorder %s21, 0
      %p146 = por %p144, %p145
      %p147 = scmp.ne.s32.totalorder %s139, %s141
      %p148 = scmp.eq.s32.totalorder %s26, 1
      %p149 = por %p147, %p148
      %p150 = scmp.ne.s32.totalorder %s141, %s142
      %p151 = scmp.eq.s32.totalorder %s26, 0
      %p152 = por %p150, %p151
      %p153 = scmp.ne.s32.totalorder %s141, %s142
      %p154 = scmp.eq.s32.totalorder %s27, 1
      %p155 = por %p153, %p154
      %p157 = scmp.ne.s32.totalorder %s142, %s156
      %p158 = scmp.eq.s32.totalorder %s27, 0
      %p159 = por %p157, %p158
      %s161 = sadd.s32 %s160, 1
      %p164 = scmp.eq.s32.totalorder %s21, 1
      %p165 = scmp.ne.s32.totalorder %s160, %s162
      %p166 = scmp.eq.s32.totalorder %s21, 0
      %p167 = por %p165, %p166
      %p168 = scmp.ne.s32.totalorder %s160, %s162
      %p169 = scmp.eq.s32.totalorder %s26, 1
      %p170 = por %p168, %p169
      %p171 = scmp.ne.s32.totalorder %s162, %s163
      %p172 = scmp.eq.s32.totalorder %s26, 0
      %p173 = por %p171, %p172
      %p174 = scmp.ne.s32.totalorder %s162, %s163
      %p175 = scmp.eq.s32.totalorder %s27, 1
      %p176 = por %p174, %p175
      %p178 = scmp.ne.s32.totalorder %s163, %s177
      %p179 = scmp.eq.s32.totalorder %s27, 0
      %p180 = por %p178, %p179
      %s182 = sadd.s32 %s181, 1
      %p185 = scmp.eq.s32.totalorder %s21, 1
      %p186 = scmp.ne.s32.totalorder %s181, %s183
      %p187 = scmp.eq.s32.totalorder %s21, 0
      %p188 = por %p186, %p187
      %p189 = scmp.ne.s32.totalorder %s181, %s183
      %p190 = scmp.eq.s32.totalorder %s26, 1
      %p191 = por %p189, %p190
      %p192 = scmp.ne.s32.totalorder %s183, %s184
      %p193 = scmp.eq.s32.totalorder %s26, 0
      %p194 = por %p192, %p193
      %p195 = scmp.ne.s32.totalorder %s183, %s184
      %p196 = scmp.eq.s32.totalorder %s27, 1
      %p197 = por %p195, %p196
      %p199 = scmp.ne.s32.totalorder %s184, %s198
      %p200 = scmp.eq.s32.totalorder %s27, 0
      %p201 = por %p199, %p200
      %s203 = sadd.s32 %s202, 1
      %p206 = scmp.eq.s32.totalorder %s21, 1
      %p207 = scmp.ne.s32.totalorder %s202, %s204
      %p208 = scmp.eq.s32.totalorder %s21, 0
      %p209 = por %p207, %p208
      %p210 = scmp.ne.s32.totalorder %s202, %s204
      %p211 = scmp.eq.s32.totalorder %s26, 1
      %p212 = por %p210, %p211
      %p213 = scmp.ne.s32.totalorder %s204, %s205
      %p214 = scmp.eq.s32.totalorder %s26, 0
      %p215 = por %p213, %p214
      %p216 = scmp.ne.s32.totalorder %s204, %s205
      %p217 = scmp.eq.s32.totalorder %s27, 1
      %p218 = por %p216, %p217
      %p220 = scmp.ne.s32.totalorder %s205, %s219
      %p221 = scmp.eq.s32.totalorder %s27, 0
      %p222 = por %p220, %p221
      %s224 = sadd.s32 %s223, 1
      %p227 = scmp.eq.s32.totalorder %s21, 1
      %p228 = scmp.ne.s32.totalorder %s223, %s225
      %p229 = scmp.eq.s32.totalorder %s21, 0
      %p230 = por %p228, %p229
      %p231 = scmp.ne.s32.totalorder %s223, %s225
      %p232 = scmp.eq.s32.totalorder %s26, 1
      %p233 = por %p231, %p232
      %p234 = scmp.ne.s32.totalorder %s225, %s226
      %p235 = scmp.eq.s32.totalorder %s26, 0
      %p236 = por %p234, %p235
      %p237 = scmp.ne.s32.totalorder %s225, %s226
      %p238 = scmp.eq.s32.totalorder %s27, 1
      %p239 = por %p237, %p238
      %p241 = scmp.ne.s32.totalorder %s226, %s240
      %p242 = scmp.eq.s32.totalorder %s27, 0
      %p243 = por %p241, %p242
      %s245 = sadd.s32 %s244, 1
      %p248 = scmp.eq.s32.totalorder %s21, 1
      %p249 = scmp.ne.s32.totalorder %s244, %s246
      %p250 = scmp.eq.s32.totalorder %s21, 0
      %p251 = por %p249, %p250
      %p252 = scmp.ne.s32.totalorder %s244, %s246
      %p253 = scmp.eq.s32.totalorder %s26, 1
      %p254 = por %p252, %p253
      %p255 = scmp.ne.s32.totalorder %s246, %s247
      %p256 = scmp.eq.s32.totalorder %s26, 0
      %p257 = por %p255, %p256
      %p258 = scmp.ne.s32.totalorder %s246, %s247
      %p259 = scmp.eq.s32.totalorder %s27, 1
      %p260 = por %p258, %p259
      %p262 = scmp.ne.s32.totalorder %s247, %s261
      %p263 = scmp.eq.s32.totalorder %s27, 0
      %p264 = por %p262, %p263
      %s266 = sadd.s32 %s265, 1
      %p269 = scmp.eq.s32.totalorder %s21, 1
      %p270 = scmp.ne.s32.totalorder %s265, %s267
      %p271 = scmp.eq.s32.totalorder %s21, 0
      %p272 = por %p270, %p271
      %p273 = scmp.ne.s32.totalorder %s265, %s267
      %p274 = scmp.eq.s32.totalorder %s26, 1
      %p275 = por %p273, %p274
      %p276 = scmp.ne.s32.totalorder %s267, %s268
      %p277 = scmp.eq.s32.totalorder %s26, 0
      %p278 = por %p276, %p277
      %p279 = scmp.ne.s32.totalorder %s267, %s268
      %p280 = scmp.eq.s32.totalorder %s27, 1
      %p281 = por %p279, %p280
      %p283 = scmp.ne.s32.totalorder %s268, %s282
      %p284 = scmp.eq.s32.totalorder %s27, 0
      %p285 = por %p283, %p284
      %s286 = ssub.s32 %s21, %s28
      %p287 = scmp.eq.s32.totalorder %s286, 0
      %s289 = sadd.s32 %s288, 1
      %s290 = scalar_select %p287, %s288, %s289
      %p293 = pneg %p287
      %p294 = scmp.eq.s32.totalorder %s21, 1
      %p295 = por %p293, %p294
      %p296 = scmp.ne.s32.totalorder %s288, %s291
      %p297 = scmp.eq.s32.totalorder %s21, 0
      %p298 = por %p296, %p297
      %p299 = scmp.ne.s32.totalorder %s288, %s291
      %p300 = scmp.eq.s32.totalorder %s26, 1
      %p301 = por %p299, %p300
      %p302 = scmp.ne.s32.totalorder %s291, %s292
      %p303 = scmp.eq.s32.totalorder %s26, 0
      %p304 = por %p302, %p303
      %p305 = scmp.ne.s32.totalorder %s291, %s292
      %p306 = scmp.eq.s32.totalorder %s27, 1
      %p307 = por %p305, %p306
      %p309 = scmp.ne.s32.totalorder %s292, %s308
      %p310 = scmp.eq.s32.totalorder %s27, 0
      %p311 = por %p309, %p310
      %p312 = scmp.le.s32.totalorder 1, %s21
      %p313 = scmp.lt.s32.totalorder %s21, 3
      %p314 = pnand %p312, %p313
      %p315 = pneg %p314
      // Predicated region
      $region9: #{tpu_custom_call.1} parent=5 // pred_check
        _
      $region10: #{tpu_custom_call.1} parent=5 // pred_check_branch
        %317 = sbr.rel (%p314) target = $region12
      $region11: #{tpu_custom_call.1} parent=5 // pred_region
        %s318 = ssub.s32 %s21, 1
        // Predicated region
        $region13: #{tpu_custom_call.1} parent=11 // pred_check
          %p319 = pneg %p68
        $region14: #{tpu_custom_call.1} parent=11 // pred_check_branch
          %321 = sbr.rel (%p319) target = $region16
        $region15: #{tpu_custom_call.1} parent=11 // pred_region
          _
        $region16: #{tpu_custom_call.1} parent=11 // pred_fallthru
          _
        // Predicated region
        $region17: #{tpu_custom_call.1} parent=11 // pred_check
          %p322 = pneg %p89
        $region18: #{tpu_custom_call.1} parent=11 // pred_check_branch
          %324 = sbr.rel (%p322) target = $region20
        $region19: #{tpu_custom_call.1} parent=11 // pred_region
          _
        $region20: #{tpu_custom_call.1} parent=11 // pred_fallthru
          _
        // Predicated region
        $region21: #{tpu_custom_call.1} parent=11 // pred_check
          %p325 = pneg %p110
        $region22: #{tpu_custom_call.1} parent=11 // pred_check_branch
          %327 = sbr.rel (%p325) target = $region24
        $region23: #{tpu_custom_call.1} parent=11 // pred_region
          _
        $region24: #{tpu_custom_call.1} parent=11 // pred_fallthru
          _
        // Predicated region
        $region25: #{tpu_custom_call.1} parent=11 // pred_check
          %p328 = pneg %p131
        $region26: #{tpu_custom_call.1} parent=11 // pred_check_branch
          %330 = sbr.rel (%p328) target = $region28
        $region27: #{tpu_custom_call.1} parent=11 // pred_region
          _
        $region28: #{tpu_custom_call.1} parent=11 // pred_fallthru
          _
        // Predicated region
        $region29: #{tpu_custom_call.1} parent=11 // pred_check
          %p331 = pneg %p152
        $region30: #{tpu_custom_call.1} parent=11 // pred_check_branch
          %333 = sbr.rel (%p331) target = $region32
        $region31: #{tpu_custom_call.1} parent=11 // pred_region
          _
        $region32: #{tpu_custom_call.1} parent=11 // pred_fallthru
          _
        // Predicated region
        $region33: #{tpu_custom_call.1} parent=11 // pred_check
          %p334 = pneg %p173
        $region34: #{tpu_custom_call.1} parent=11 // pred_check_branch
          %336 = sbr.rel (%p334) target = $region36
        $region35: #{tpu_custom_call.1} parent=11 // pred_region
          _
        $region36: #{tpu_custom_call.1} parent=11 // pred_fallthru
          _
        // Predicated region
        $region37: #{tpu_custom_call.1} parent=11 // pred_check
          %p337 = pneg %p194
        $region38: #{tpu_custom_call.1} parent=11 // pred_check_branch
          %339 = sbr.rel (%p337) target = $region40
        $region39: #{tpu_custom_call.1} parent=11 // pred_region
          _
        $region40: #{tpu_custom_call.1} parent=11 // pred_fallthru
          _
        // Predicated region
        $region41: #{tpu_custom_call.1} parent=11 // pred_check
          %p340 = pneg %p215
        $region42: #{tpu_custom_call.1} parent=11 // pred_check_branch
          %342 = sbr.rel (%p340) target = $region44
        $region43: #{tpu_custom_call.1} parent=11 // pred_region
          _
        $region44: #{tpu_custom_call.1} parent=11 // pred_fallthru
          _
        // Predicated region
        $region45: #{tpu_custom_call.1} parent=11 // pred_check
          %p343 = pneg %p236
        $region46: #{tpu_custom_call.1} parent=11 // pred_check_branch
          %345 = sbr.rel (%p343) target = $region48
        $region47: #{tpu_custom_call.1} parent=11 // pred_region
          _
        $region48: #{tpu_custom_call.1} parent=11 // pred_fallthru
          _
        // Predicated region
        $region49: #{tpu_custom_call.1} parent=11 // pred_check
          %p346 = pneg %p257
        $region50: #{tpu_custom_call.1} parent=11 // pred_check_branch
          %348 = sbr.rel (%p346) target = $region52
        $region51: #{tpu_custom_call.1} parent=11 // pred_region
          _
        $region52: #{tpu_custom_call.1} parent=11 // pred_fallthru
          _
        // Predicated region
        $region53: #{tpu_custom_call.1} parent=11 // pred_check
          %p349 = pneg %p278
        $region54: #{tpu_custom_call.1} parent=11 // pred_check_branch
          %351 = sbr.rel (%p349) target = $region56
        $region55: #{tpu_custom_call.1} parent=11 // pred_region
          _
        $region56: #{tpu_custom_call.1} parent=11 // pred_fallthru
          _
      $region12: #{tpu_custom_call.1} parent=5 // pred_fallthru
        _
      %p352 = scmp.lt.s32.totalorder %s21, 2
      // Predicated region
      $region57: #{tpu_custom_call.1} parent=5 // pred_check
        %p353 = pneg %p352
      $region58: #{tpu_custom_call.1} parent=5 // pred_check_branch
        %355 = sbr.rel (%p353) target = $region60
      $region59: #{tpu_custom_call.1} parent=5 // pred_region
        // Predicated region
        $region61: #{tpu_custom_call.1} parent=59 // pred_check
          %p356 = pneg %p41
        $region62: #{tpu_custom_call.1} parent=59 // pred_check_branch
          %358 = sbr.rel (%p356) target = $region64
        $region63: #{tpu_custom_call.1} parent=59 // pred_region
          %p359 = scmp.lt.s32.totalorder %s21, 1
          %s360 = scalar_select %p359, %s21, 1
          %s361 = smul.addr %s360, 4
          %s362 = scalar_lea.vmem %s0, %s361
        $region64: #{tpu_custom_call.1} parent=59 // pred_fallthru
          _
      $region60: #{tpu_custom_call.1} parent=5 // pred_fallthru
        _
      %p363 = scmp.le.s32.totalorder 1, %s21
      %p364 = scmp.lt.s32.totalorder %s21, 3
      %p365 = pnand %p363, %p364
      %p366 = pneg %p365
      // Predicated region
      $region65: #{tpu_custom_call.1} parent=5 // pred_check
        _
      $region66: #{tpu_custom_call.1} parent=5 // pred_check_branch
        %368 = sbr.rel (%p365) target = $region68
      $region67: #{tpu_custom_call.1} parent=5 // pred_region
        %s369 = ssub.s32 %s21, 1
        %p370 = scmp.lt.s32.totalorder %s26, 1
        %s371 = scalar_select %p370, %s26, 1
        %s372 = smul.addr %s371, 4
        %s373 = scalar_lea.vmem %s0, %s372
        %p374 = pneg %p47
        %p375 = pneg %p44
        %p376 = pneg %p68
        %p377 = pneg %p65
        %p378 = pneg %p89
        %p379 = pneg %p86
        %p380 = pneg %p110
        %p381 = pneg %p107
        %p382 = pneg %p131
        %p383 = pneg %p128
        %p384 = pneg %p152
        %p385 = pneg %p149
        %p386 = pneg %p173
        %p387 = pneg %p170
        %p388 = pneg %p194
        %p389 = pneg %p191
        %p390 = pneg %p215
        %p391 = pneg %p212
        %p392 = pneg %p236
        %p393 = pneg %p233
        %p394 = pneg %p257
        %p395 = pneg %p254
        %p396 = pneg %p278
        %p397 = pneg %p275
        %p398 = pneg %p304
        %p399 = pneg %p301
        %s400 = sand.u32 %s291, 1
        %s401 = scalar_lea.sflag [#allocation4], %s400
        %s402 = sand.u32 %s291, 1
        %s403 = smul.addr %s402, 8
        %s404 = scalar_lea.vmem [#allocation3], %s403
        %p405 = scmp.lt.s32.totalorder %s26, 1
        %s406 = scalar_select %p405, %s26, 1
        %s407 = smul.addr %s406, 4
        %s408 = scalar_lea.vmem %s0, %s407
        %v410 = vld [vmem:[%s408] sm:$0xf]
        %v411 = vld [vmem:[%s9] sm:$0xff]
        %v412 = vld [vmem:[%s10] sm:$0xff]
        %v413 = vld [vmem:[%s11] sm:$0xff]
        %vm414 = vcmask 261120
        %415 = vst.msk [vmem:[#allocation2] sm:$0xff] %vm414, 0.0
        %v416 = vld [vmem:[%s1] sm:$0xf]
        %v417 = vld [vmem:[%s1 + $0x4] sm:$0xf]
        %v418 = vld [vmem:[%s1 + $0x8] sm:$0xf]
        %v419 = vld [vmem:[%s1 + $0xc] sm:$0xf]
        %v420 = vld [vmem:[%s4] sm:$0x1]
        %v422 = vlaneseq
        %v423 = vshrl.u32 %v422, 7
        %v424 = vsub.s32 0, %v423
        %v425 = vrot.slane %v420, %v424
        %v431 = vunpack.c.l.b16 %v416
        %v432 = vunpack.c.l.b16 %v417
        %v433 = vunpack.c.l.b16 %v418
        %v434 = vunpack.c.l.b16 %v419
        %v435 = vpack.c.b16 %v432, %v431
        %v436 = vpack.c.b16 %v434, %v433
        %v440 = vsel %vm414, %v410, 0
        %442 = vmatprep.subr.bf16.mxu0 0
        %443 = vmatpush1.bf16.msra.mxu0 %v435
        %444 = vmatprep.subr.bf16.mxu0 0
        %445 = vmatpush1.bf16.msra.mxu0 %v436
        %446 = vmatprep.subr.bf16.mxu0 0
        %447 = vmatpush1.bf16.msra.mxu0 0
        %448 = vmatprep.subr.bf16.mxu0 0
        %449 = vmatpush1.bf16.msra.mxu0 0
        %450 = vmatprep.subr.bf16.mxu0 0
        %451 = vmatpush1.bf16.msra.mxu0 0
        %452 = vmatprep.subr.bf16.mxu0 0
        %453 = vmatpush1.bf16.msra.mxu0 0
        %454 = vmatprep.subr.bf16.mxu0 0
        %455 = vmatpush1.bf16.msra.mxu0 0
        %456 = vmatprep.subr.bf16.mxu0 0
        %457 = vmatpush1.bf16.msra.mxu0 0
        %458 = vmatprep.subr.bf16.mxu0 0
        %459 = vmatpush1.bf16.msra.mxu0 0
        %460 = vmatprep.subr.bf16.mxu0 0
        %461 = vmatpush1.bf16.msra.mxu0 0
        %462 = vmatprep.subr.bf16.mxu0 0
        %463 = vmatpush1.bf16.msra.mxu0 0
        %464 = vmatprep.subr.bf16.mxu0 0
        %465 = vmatpush1.bf16.msra.mxu0 0
        %466 = vmatprep.subr.bf16.mxu0 0
        %467 = vmatpush1.bf16.msra.mxu0 0
        %468 = vmatprep.subr.bf16.mxu0 0
        %469 = vmatpush1.bf16.msra.mxu0 0
        %470 = vmatprep.subr.bf16.mxu0 0
        %471 = vmatpush1.bf16.msra.mxu0 0
        %472 = vmatprep.subr.bf16.mxu0 0
        %473 = vmatpush1.bf16.msra.mxu0 0
        %474 = vmatprep.mubr.bf16.mxu0 0
        %475 = vmatmul.mubr.bf16.gmra.mrb[0].mxu0 %v440
        %v476 = vpop.f32.mrb[0].mxu0
        %v477 = vadd.f32 %v425, %v476
        %v478 = vpop.f32.mrb[0].mxu0
        %v479 = vpop.f32.mrb[0].mxu0
        %v480 = vpop.f32.mrb[0].mxu0
        %481 = vdwg.mxu0
        %v482 = vld [vmem:[%s2] sm:$0xf]
        %v483 = vld [vmem:[%s2 + $0x4] sm:$0xf]
        %v484 = vld [vmem:[%s2 + $0x8] sm:$0xf]
        %v485 = vld [vmem:[%s2 + $0xc] sm:$0xf]
        %v486 = vld [vmem:[%s5] sm:$0x1]
        %v488 = vlaneseq
        %v489 = vshrl.u32 %v488, 7
        %v490 = vsub.s32 0, %v489
        %v491 = vrot.slane %v486, %v490
        %v497 = vunpack.c.l.b16 %v482
        %v498 = vunpack.c.l.b16 %v483
        %v499 = vunpack.c.l.b16 %v484
        %v500 = vunpack.c.l.b16 %v485
        %v501 = vpack.c.b16 %v498, %v497
        %v502 = vpack.c.b16 %v500, %v499
        %505 = vmatprep.subr.bf16.mxu0 0
        %506 = vmatpush1.bf16.msra.mxu0 %v501
        %507 = vmatprep.subr.bf16.mxu0 0
        %508 = vmatpush1.bf16.msra.mxu0 %v502
        %509 = vmatprep.subr.bf16.mxu0 0
        %510 = vmatpush1.bf16.msra.mxu0 0
        %511 = vmatprep.subr.bf16.mxu0 0
        %512 = vmatpush1.bf16.msra.mxu0 0
        %513 = vmatprep.subr.bf16.mxu0 0
        %514 = vmatpush1.bf16.msra.mxu0 0
        %515 = vmatprep.subr.bf16.mxu0 0
        %516 = vmatpush1.bf16.msra.mxu0 0
        %517 = vmatprep.subr.bf16.mxu0 0
        %518 = vmatpush1.bf16.msra.mxu0 0
        %519 = vmatprep.subr.bf16.mxu0 0
        %520 = vmatpush1.bf16.msra.mxu0 0
        %521 = vmatprep.subr.bf16.mxu0 0
        %522 = vmatpush1.bf16.msra.mxu0 0
        %523 = vmatprep.subr.bf16.mxu0 0
        %524 = vmatpush1.bf16.msra.mxu0 0
        %525 = vmatprep.subr.bf16.mxu0 0
        %526 = vmatpush1.bf16.msra.mxu0 0
        %527 = vmatprep.subr.bf16.mxu0 0
        %528 = vmatpush1.bf16.msra.mxu0 0
        %529 = vmatprep.subr.bf16.mxu0 0
        %530 = vmatpush1.bf16.msra.mxu0 0
        %531 = vmatprep.subr.bf16.mxu0 0
        %532 = vmatpush1.bf16.msra.mxu0 0
        %533 = vmatprep.subr.bf16.mxu0 0
        %534 = vmatpush1.bf16.msra.mxu0 0
        %535 = vmatprep.subr.bf16.mxu0 0
        %536 = vmatpush1.bf16.msra.mxu0 0
        %537 = vmatprep.mubr.bf16.mxu0 0
        %538 = vmatmul.mubr.bf16.gmra.mrb[0].mxu0 %v440
        %v539 = vpop.f32.mrb[0].mxu0
        %v540 = vadd.f32 %v491, %v539
        %v541 = vpop.f32.mrb[0].mxu0
        %v542 = vpop.f32.mrb[0].mxu0
        %v543 = vpop.f32.mrb[0].mxu0
        %544 = vdwg.mxu0
        %v545 = vld [vmem:[%s3] sm:$0xf]
        %v546 = vld [vmem:[%s3 + $0x4] sm:$0xf]
        %v547 = vld [vmem:[%s3 + $0x8] sm:$0xf]
        %v548 = vld [vmem:[%s3 + $0xc] sm:$0xf]
        %v549 = vld [vmem:[%s6] sm:$0x1]
        %v551 = vlaneseq
        %v552 = vshrl.u32 %v551, 7
        %v553 = vsub.s32 0, %v552
        %v554 = vrot.slane %v549, %v553
        %v560 = vunpack.c.l.b16 %v545
        %v561 = vunpack.c.l.b16 %v546
        %v562 = vunpack.c.l.b16 %v547
        %v563 = vunpack.c.l.b16 %v548
        %v564 = vpack.c.b16 %v561, %v560
        %v565 = vpack.c.b16 %v563, %v562
        %568 = vmatprep.subr.bf16.mxu0 0
        %569 = vmatpush1.bf16.msra.mxu0 %v564
        %570 = vmatprep.subr.bf16.mxu0 0
        %571 = vmatpush1.bf16.msra.mxu0 %v565
        %572 = vmatprep.subr.bf16.mxu0 0
        %573 = vmatpush1.bf16.msra.mxu0 0
        %574 = vmatprep.subr.bf16.mxu0 0
        %575 = vmatpush1.bf16.msra.mxu0 0
        %576 = vmatprep.subr.bf16.mxu0 0
        %577 = vmatpush1.bf16.msra.mxu0 0
        %578 = vmatprep.subr.bf16.mxu0 0
        %579 = vmatpush1.bf16.msra.mxu0 0
        %580 = vmatprep.subr.bf16.mxu0 0
        %581 = vmatpush1.bf16.msra.mxu0 0
        %582 = vmatprep.subr.bf16.mxu0 0
        %583 = vmatpush1.bf16.msra.mxu0 0
        %584 = vmatprep.subr.bf16.mxu0 0
        %585 = vmatpush1.bf16.msra.mxu0 0
        %586 = vmatprep.subr.bf16.mxu0 0
        %587 = vmatpush1.bf16.msra.mxu0 0
        %588 = vmatprep.subr.bf16.mxu0 0
        %589 = vmatpush1.bf16.msra.mxu0 0
        %590 = vmatprep.subr.bf16.mxu0 0
        %591 = vmatpush1.bf16.msra.mxu0 0
        %592 = vmatprep.subr.bf16.mxu0 0
        %593 = vmatpush1.bf16.msra.mxu0 0
        %594 = vmatprep.subr.bf16.mxu0 0
        %595 = vmatpush1.bf16.msra.mxu0 0
        %596 = vmatprep.subr.bf16.mxu0 0
        %597 = vmatpush1.bf16.msra.mxu0 0
        %598 = vmatprep.subr.bf16.mxu0 0
        %599 = vmatpush1.bf16.msra.mxu0 0
        %600 = vmatprep.mubr.bf16.mxu0 0
        %601 = vmatmul.mubr.bf16.gmra.mrb[0].mxu0 %v440
        %v602 = vpop.f32.mrb[0].mxu0
        %v603 = vadd.f32 %v554, %v602
        %v604 = vpop.f32.mrb[0].mxu0
        %v605 = vpop.f32.mrb[0].mxu0
        %v606 = vpop.f32.mrb[0].mxu0
        %607 = vdwg.mxu0
        %v608 = vpack.c.bf16 %v477, %v477
        %v609 = vpack.c.bf16 %v540, %v540
        %vm610 = vcmask 64512
        %v612 = vsel %vm610, %v608, 0
        %v615 = vsel %vm610, %v609, 0
        %617 = vmatprep.subr.bf16.mxu0 0
        %618 = vmatpush1.bf16.xpose.msra.mxu0 %v615
        %619 = vmatprep.subr.bf16.mxu0 0
        %620 = vmatpush1.bf16.xpose.msra.mxu0 0
        %621 = vmatprep.subr.bf16.mxu0 0
        %622 = vmatpush1.bf16.xpose.msra.mxu0 0
        %623 = vmatprep.subr.bf16.mxu0 0
        %624 = vmatpush1.bf16.xpose.msra.mxu0 0
        %625 = vmatprep.subr.bf16.mxu0 0
        %626 = vmatpush1.bf16.xpose.msra.mxu0 0
        %627 = vmatprep.subr.bf16.mxu0 0
        %628 = vmatpush1.bf16.xpose.msra.mxu0 0
        %629 = vmatprep.subr.bf16.mxu0 0
        %630 = vmatpush1.bf16.xpose.msra.mxu0 0
        %631 = vmatprep.subr.bf16.mxu0 0
        %632 = vmatpush1.bf16.xpose.msra.mxu0 0
        %633 = vmatprep.subr.bf16.mxu0 0
        %634 = vmatpush1.bf16.xpose.msra.mxu0 0
        %635 = vmatprep.subr.bf16.mxu0 0
        %636 = vmatpush1.bf16.xpose.msra.mxu0 0
        %637 = vmatprep.subr.bf16.mxu0 0
        %638 = vmatpush1.bf16.xpose.msra.mxu0 0
        %639 = vmatprep.subr.bf16.mxu0 0
        %640 = vmatpush1.bf16.xpose.msra.mxu0 0
        %641 = vmatprep.subr.bf16.mxu0 0
        %642 = vmatpush1.bf16.xpose.msra.mxu0 0
        %643 = vmatprep.subr.bf16.mxu0 0
        %644 = vmatpush1.bf16.xpose.msra.mxu0 0
        %645 = vmatprep.subr.bf16.mxu0 0
        %646 = vmatpush1.bf16.xpose.msra.mxu0 0
        %647 = vmatprep.subr.bf16.mxu0 0
        %648 = vmatpush1.bf16.xpose.msra.mxu0 0
        %649 = vmatprep.mubr.bf16.mxu0 0
        %650 = vmatmul.mubr.bf16.gmra.mrb[0].mxu0 %v612
        %v651 = vpop.f32.mrb[0].mxu0
        %v652 = vadd.f32 0.0, %v651
        %v653 = vpop.f32.mrb[0].mxu0
        %v654 = vpop.f32.mrb[0].mxu0
        %v655 = vpop.f32.mrb[0].mxu0
        %656 = vdwg.mxu0
        %v657 = vmul.f32 %v652, 0.35355338
        %v658 = vsel %vm610, %v657, -inf
        %659 = vmax.xlane.f32.xlu0 %v658
        %v660 = vpop.xlane.xlu0 %659
        %v661 = vsub.f32 %v657, %v660
        %v662 = vmul.f32 %v661, 1.442695
        %v663 = vpow.pop %v662
        %v664 = vsel %vm610, %v663, 0.0
        %665 = vadd.xlane.f32.xlu0 %v664
        %v666 = vpop.xlane.xlu0 %665
        %v667 = vrcp.pop %v666
        %v668 = vmul.f32 %v663, %v667
        %v669 = vmul.f32 %v411, %v668
        %v670 = vsel %vm610, %v669, 0.0
        %671 = vadd.xlane.f32.xlu0 %v670
        %v672 = vpop.xlane.xlu0 %671
        %v673 = vrot.slane %v672, 4
        %v674 = vadd.f32 %v672, %v673
        %v675 = vrot.slane %v674, 2
        %v676 = vadd.f32 %v674, %v675
        %v677 = vrot.slane %v676, 1
        %v678 = vadd.f32 %v676, %v677
        %s679 = vtos %v678
        %s680 = smul.f32 %s679, 0.015625
        %v681 = vmul.f32 %v669, %v669
        %v682 = vsel %vm610, %v681, 0.0
        %683 = vadd.xlane.f32.xlu0 %v682
        %v684 = vpop.xlane.xlu0 %683
        %v685 = vrot.slane %v684, 4
        %v686 = vadd.f32 %v684, %v685
        %v687 = vrot.slane %v686, 2
        %v688 = vadd.f32 %v686, %v687
        %v689 = vrot.slane %v688, 1
        %v690 = vadd.f32 %v688, %v689
        %s691 = vtos %v690
        %s692 = smul.f32 %s691, 0.015625
        %s693 = smul.f32 %s680, %s680
        %s694 = ssub.f32 %s692, %s693
        %v695 = vstv %s680
        %v696 = vsub.f32 %v669, %v695
        %s697 = sadd.f32 %s694, 1e-05
        %v698 = vstv %s697
        %v699 = vrsqrt.pop %v698
        %s700 = vtos %v699
        %v701 = vstv %s700
        %v702 = vmul.f32 %v696, %v701
        %v703 = vmul.f32 %v702, %v412
        %v704 = vadd.f32 %v703, %v413
        %v705 = vpack.c.bf16 %v704, %v704
        %v706 = vpack.c.bf16 %v603, %v603
        %v708 = vsel %vm610, %v705, 0
        %vm710 = vcmask 1043456
        %v712 = vsel %vm710, %v706, 0
        %714 = vmatprep.subr.bf16.mxu0 0
        %715 = vmatpush1.bf16.msra.mxu0 %v712
        %716 = vmatprep.subr.bf16.mxu0 0
        %717 = vmatpush1.bf16.msra.mxu0 0
        %718 = vmatprep.subr.bf16.mxu0 0
        %719 = vmatpush1.bf16.msra.mxu0 0
        %720 = vmatprep.subr.bf16.mxu0 0
        %721 = vmatpush1.bf16.msra.mxu0 0
        %722 = vmatprep.subr.bf16.mxu0 0
        %723 = vmatpush1.bf16.msra.mxu0 0
        %724 = vmatprep.subr.bf16.mxu0 0
        %725 = vmatpush1.bf16.msra.mxu0 0
        %726 = vmatprep.subr.bf16.mxu0 0
        %727 = vmatpush1.bf16.msra.mxu0 0
        %728 = vmatprep.subr.bf16.mxu0 0
        %729 = vmatpush1.bf16.msra.mxu0 0
        %730 = vmatprep.subr.bf16.mxu0 0
        %731 = vmatpush1.bf16.msra.mxu0 0
        %732 = vmatprep.subr.bf16.mxu0 0
        %733 = vmatpush1.bf16.msra.mxu0 0
        %734 = vmatprep.subr.bf16.mxu0 0
        %735 = vmatpush1.bf16.msra.mxu0 0
        %736 = vmatprep.subr.bf16.mxu0 0
        %737 = vmatpush1.bf16.msra.mxu0 0
        %738 = vmatprep.subr.bf16.mxu0 0
        %739 = vmatpush1.bf16.msra.mxu0 0
        %740 = vmatprep.subr.bf16.mxu0 0
        %741 = vmatpush1.bf16.msra.mxu0 0
        %742 = vmatprep.subr.bf16.mxu0 0
        %743 = vmatpush1.bf16.msra.mxu0 0
        %744 = vmatprep.subr.bf16.mxu0 0
        %745 = vmatpush1.bf16.msra.mxu0 0
        %746 = vmatprep.mubr.bf16.mxu0 0
        %747 = vmatmul.mubr.bf16.gmra.mrb[0].mxu0 %v708
        %v748 = vpop.f32.mrb[0].mxu0
        %v749 = vadd.f32 0.0, %v748
        %v750 = vpop.f32.mrb[0].mxu0
        %v751 = vpop.f32.mrb[0].mxu0
        %v752 = vpop.f32.mrb[0].mxu0
        %753 = vdwg.mxu0
        %v754 = vld [vmem:[#allocation2] sm:$0xff]
        %v755 = vpack.c.bf16 %v749, %v749
        %v756 = vld [vmem:[%s7] sm:$0xf]
        %v758 = vsel %vm610, %v755, 0
        %v761 = vsel %vm710, %v756, 0
        %763 = vmatprep.subr.bf16.mxu0 0
        %764 = vmatpush1.bf16.msra.mxu0 %v761
        %765 = vmatprep.subr.bf16.mxu0 0
        %766 = vmatpush1.bf16.msra.mxu0 0
        %767 = vmatprep.subr.bf16.mxu0 0
        %768 = vmatpush1.bf16.msra.mxu0 0
        %769 = vmatprep.subr.bf16.mxu0 0
        %770 = vmatpush1.bf16.msra.mxu0 0
        %771 = vmatprep.subr.bf16.mxu0 0
        %772 = vmatpush1.bf16.msra.mxu0 0
        %773 = vmatprep.subr.bf16.mxu0 0
        %774 = vmatpush1.bf16.msra.mxu0 0
        %775 = vmatprep.subr.bf16.mxu0 0
        %776 = vmatpush1.bf16.msra.mxu0 0
        %777 = vmatprep.subr.bf16.mxu0 0
        %778 = vmatpush1.bf16.msra.mxu0 0
        %779 = vmatprep.subr.bf16.mxu0 0
        %780 = vmatpush1.bf16.msra.mxu0 0
        %781 = vmatprep.subr.bf16.mxu0 0
        %782 = vmatpush1.bf16.msra.mxu0 0
        %783 = vmatprep.subr.bf16.mxu0 0
        %784 = vmatpush1.bf16.msra.mxu0 0
        %785 = vmatprep.subr.bf16.mxu0 0
        %786 = vmatpush1.bf16.msra.mxu0 0
        %787 = vmatprep.subr.bf16.mxu0 0
        %788 = vmatpush1.bf16.msra.mxu0 0
        %789 = vmatprep.subr.bf16.mxu0 0
        %790 = vmatpush1.bf16.msra.mxu0 0
        %791 = vmatprep.subr.bf16.mxu0 0
        %792 = vmatpush1.bf16.msra.mxu0 0
        %793 = vmatprep.subr.bf16.mxu0 0
        %794 = vmatpush1.bf16.msra.mxu0 0
        %795 = vmatprep.mubr.bf16.mxu0 0
        %796 = vmatmul.mubr.bf16.gmra.mrb[0].mxu0 %v758
        %v797 = vpop.f32.mrb[0].mxu0
        %v798 = vadd.f32 0.0, %v797
        %v799 = vpop.f32.mrb[0].mxu0
        %v800 = vpop.f32.mrb[0].mxu0
        %v801 = vpop.f32.mrb[0].mxu0
        %802 = vdwg.mxu0
        %v803 = vadd.f32 %v754, %v798
        %804 = vst.msk [vmem:[#allocation2] sm:$0xff] %vm414, %v803
        %s805 = scalar_lea.vmem %s1, 16
        %v806 = vld [vmem:[%s805] sm:$0xf]
        %v807 = vld [vmem:[%s805 + $0x4] sm:$0xf]
        %v808 = vld [vmem:[%s805 + $0x8] sm:$0xf]
        %v809 = vld [vmem:[%s805 + $0xc] sm:$0xf]
        %s810 = scalar_lea.vmem %s4, 1
        %v811 = vld [vmem:[%s810] sm:$0x1]
        %v813 = vlaneseq
        %v814 = vshrl.u32 %v813, 7
        %v815 = vsub.s32 0, %v814
        %v816 = vrot.slane %v811, %v815
        %v822 = vunpack.c.l.b16 %v806
        %v823 = vunpack.c.l.b16 %v807
        %v824 = vunpack.c.l.b16 %v808
        %v825 = vunpack.c.l.b16 %v809
        %v826 = vpack.c.b16 %v823, %v822
        %v827 = vpack.c.b16 %v825, %v824
        %830 = vmatprep.subr.bf16.mxu0 0
        %831 = vmatpush1.bf16.msra.mxu0 %v826
        %832 = vmatprep.subr.bf16.mxu0 0
        %833 = vmatpush1.bf16.msra.mxu0 %v827
        %834 = vmatprep.subr.bf16.mxu0 0
        %835 = vmatpush1.bf16.msra.mxu0 0
        %836 = vmatprep.subr.bf16.mxu0 0
        %837 = vmatpush1.bf16.msra.mxu0 0
        %838 = vmatprep.subr.bf16.mxu0 0
        %839 = vmatpush1.bf16.msra.mxu0 0
        %840 = vmatprep.subr.bf16.mxu0 0
        %841 = vmatpush1.bf16.msra.mxu0 0
        %842 = vmatprep.subr.bf16.mxu0 0
        %843 = vmatpush1.bf16.msra.mxu0 0
        %844 = vmatprep.subr.bf16.mxu0 0
        %845 = vmatpush1.bf16.msra.mxu0 0
        %846 = vmatprep.subr.bf16.mxu0 0
        %847 = vmatpush1.bf16.msra.mxu0 0
        %848 = vmatprep.subr.bf16.mxu0 0
        %849 = vmatpush1.bf16.msra.mxu0 0
        %850 = vmatprep.subr.bf16.mxu0 0
        %851 = vmatpush1.bf16.msra.mxu0 0
        %852 = vmatprep.subr.bf16.mxu0 0
        %853 = vmatpush1.bf16.msra.mxu0 0
        %854 = vmatprep.subr.bf16.mxu0 0
        %855 = vmatpush1.bf16.msra.mxu0 0
        %856 = vmatprep.subr.bf16.mxu0 0
        %857 = vmatpush1.bf16.msra.mxu0 0
        %858 = vmatprep.subr.bf16.mxu0 0
        %859 = vmatpush1.bf16.msra.mxu0 0
        %860 = vmatprep.subr.bf16.mxu0 0
        %861 = vmatpush1.bf16.msra.mxu0 0
        %862 = vmatprep.mubr.bf16.mxu0 0
        %863 = vmatmul.mubr.bf16.gmra.mrb[0].mxu0 %v440
        %v864 = vpop.f32.mrb[0].mxu0
        %v865 = vadd.f32 %v816, %v864
        %v866 = vpop.f32.mrb[0].mxu0
        %v867 = vpop.f32.mrb[0].mxu0
        %v868 = vpop.f32.mrb[0].mxu0
        %869 = vdwg.mxu0
        %s870 = scalar_lea.vmem %s2, 16
        %v871 = vld [vmem:[%s870] sm:$0xf]
        %v872 = vld [vmem:[%s870 + $0x4] sm:$0xf]
        %v873 = vld [vmem:[%s870 + $0x8] sm:$0xf]
        %v874 = vld [vmem:[%s870 + $0xc] sm:$0xf]
        %s875 = scalar_lea.vmem %s5, 1
        %v876 = vld [vmem:[%s875] sm:$0x1]
        %v878 = vlaneseq
        %v879 = vshrl.u32 %v878, 7
        %v880 = vsub.s32 0, %v879
        %v881 = vrot.slane %v876, %v880
        %v887 = vunpack.c.l.b16 %v871
        %v888 = vunpack.c.l.b16 %v872
        %v889 = vunpack.c.l.b16 %v873
        %v890 = vunpack.c.l.b16 %v874
        %v891 = vpack.c.b16 %v888, %v887
        %v892 = vpack.c.b16 %v890, %v889
        %895 = vmatprep.subr.bf16.mxu0 0
        %896 = vmatpush1.bf16.msra.mxu0 %v891
        %897 = vmatprep.subr.bf16.mxu0 0
        %898 = vmatpush1.bf16.msra.mxu0 %v892
        %899 = vmatprep.subr.bf16.mxu0 0
        %900 = vmatpush1.bf16.msra.mxu0 0
        %901 = vmatprep.subr.bf16.mxu0 0
        %902 = vmatpush1.bf16.msra.mxu0 0
        %903 = vmatprep.subr.bf16.mxu0 0
        %904 = vmatpush1.bf16.msra.mxu0 0
        %905 = vmatprep.subr.bf16.mxu0 0
        %906 = vmatpush1.bf16.msra.mxu0 0
        %907 = vmatprep.subr.bf16.mxu0 0
        %908 = vmatpush1.bf16.msra.mxu0 0
        %909 = vmatprep.subr.bf16.mxu0 0
        %910 = vmatpush1.bf16.msra.mxu0 0
        %911 = vmatprep.subr.bf16.mxu0 0
        %912 = vmatpush1.bf16.msra.mxu0 0
        %913 = vmatprep.subr.bf16.mxu0 0
        %914 = vmatpush1.bf16.msra.mxu0 0
        %915 = vmatprep.subr.bf16.mxu0 0
        %916 = vmatpush1.bf16.msra.mxu0 0
        %917 = vmatprep.subr.bf16.mxu0 0
        %918 = vmatpush1.bf16.msra.mxu0 0
        %919 = vmatprep.subr.bf16.mxu0 0
        %920 = vmatpush1.bf16.msra.mxu0 0
        %921 = vmatprep.subr.bf16.mxu0 0
        %922 = vmatpush1.bf16.msra.mxu0 0
        %923 = vmatprep.subr.bf16.mxu0 0
        %924 = vmatpush1.bf16.msra.mxu0 0
        %925 = vmatprep.subr.bf16.mxu0 0
        %926 = vmatpush1.bf16.msra.mxu0 0
        %927 = vmatprep.mubr.bf16.mxu0 0
        %928 = vmatmul.mubr.bf16.gmra.mrb[0].mxu0 %v440
        %v929 = vpop.f32.mrb[0].mxu0
        %v930 = vadd.f32 %v881, %v929
        %v931 = vpop.f32.mrb[0].mxu0
        %v932 = vpop.f32.mrb[0].mxu0
        %v933 = vpop.f32.mrb[0].mxu0
        %934 = vdwg.mxu0
        %s935 = scalar_lea.vmem %s3, 16
        %v936 = vld [vmem:[%s935] sm:$0xf]
        %v937 = vld [vmem:[%s935 + $0x4] sm:$0xf]
        %v938 = vld [vmem:[%s935 + $0x8] sm:$0xf]
        %v939 = vld [vmem:[%s935 + $0xc] sm:$0xf]
        %s940 = scalar_lea.vmem %s6, 1
        %v941 = vld [vmem:[%s940] sm:$0x1]
        %v943 = vlaneseq
        %v944 = vshrl.u32 %v943, 7
        %v945 = vsub.s32 0, %v944
        %v946 = vrot.slane %v941, %v945
        %v952 = vunpack.c.l.b16 %v936
        %v953 = vunpack.c.l.b16 %v937
        %v954 = vunpack.c.l.b16 %v938
        %v955 = vunpack.c.l.b16 %v939
        %v956 = vpack.c.b16 %v953, %v952
        %v957 = vpack.c.b16 %v955, %v954
        %960 = vmatprep.subr.bf16.mxu0 0
        %961 = vmatpush1.bf16.msra.mxu0 %v956
        %962 = vmatprep.subr.bf16.mxu0 0
        %963 = vmatpush1.bf16.msra.mxu0 %v957
        %964 = vmatprep.subr.bf16.mxu0 0
        %965 = vmatpush1.bf16.msra.mxu0 0
        %966 = vmatprep.subr.bf16.mxu0 0
        %967 = vmatpush1.bf16.msra.mxu0 0
        %968 = vmatprep.subr.bf16.mxu0 0
        %969 = vmatpush1.bf16.msra.mxu0 0
        %970 = vmatprep.subr.bf16.mxu0 0
        %971 = vmatpush1.bf16.msra.mxu0 0
        %972 = vmatprep.subr.bf16.mxu0 0
        %973 = vmatpush1.bf16.msra.mxu0 0
        %974 = vmatprep.subr.bf16.mxu0 0
        %975 = vmatpush1.bf16.msra.mxu0 0
        %976 = vmatprep.subr.bf16.mxu0 0
        %977 = vmatpush1.bf16.msra.mxu0 0
        %978 = vmatprep.subr.bf16.mxu0 0
        %979 = vmatpush1.bf16.msra.mxu0 0
        %980 = vmatprep.subr.bf16.mxu0 0
        %981 = vmatpush1.bf16.msra.mxu0 0
        %982 = vmatprep.subr.bf16.mxu0 0
        %983 = vmatpush1.bf16.msra.mxu0 0
        %984 = vmatprep.subr.bf16.mxu0 0
        %985 = vmatpush1.bf16.msra.mxu0 0
        %986 = vmatprep.subr.bf16.mxu0 0
        %987 = vmatpush1.bf16.msra.mxu0 0
        %988 = vmatprep.subr.bf16.mxu0 0
        %989 = vmatpush1.bf16.msra.mxu0 0
        %990 = vmatprep.subr.bf16.mxu0 0
        %991 = vmatpush1.bf16.msra.mxu0 0
        %992 = vmatprep.mubr.bf16.mxu0 0
        %993 = vmatmul.mubr.bf16.gmra.mrb[0].mxu0 %v440
        %v994 = vpop.f32.mrb[0].mxu0
        %v995 = vadd.f32 %v946, %v994
        %v996 = vpop.f32.mrb[0].mxu0
        %v997 = vpop.f32.mrb[0].mxu0
        %v998 = vpop.f32.mrb[0].mxu0
        %999 = vdwg.mxu0
        %v1000 = vpack.c.bf16 %v865, %v865
        %v1001 = vpack.c.bf16 %v930, %v930
        %v1003 = vsel %vm610, %v1000, 0
        %v1006 = vsel %vm610, %v1001, 0
        %1008 = vmatprep.subr.bf16.mxu0 0
        %1009 = vmatpush1.bf16.xpose.msra.mxu0 %v1006
        %1010 = vmatprep.subr.bf16.mxu0 0
        %1011 = vmatpush1.bf16.xpose.msra.mxu0 0
        %1012 = vmatprep.subr.bf16.mxu0 0
        %1013 = vmatpush1.bf16.xpose.msra.mxu0 0
        %1014 = vmatprep.subr.bf16.mxu0 0
        %1015 = vmatpush1.bf16.xpose.msra.mxu0 0
        %1016 = vmatprep.subr.bf16.mxu0 0
        %1017 = vmatpush1.bf16.xpose.msra.mxu0 0
        %1018 = vmatprep.subr.bf16.mxu0 0
        %1019 = vmatpush1.bf16.xpose.msra.mxu0 0
        %1020 = vmatprep.subr.bf16.mxu0 0
        %1021 = vmatpush1.bf16.xpose.msra.mxu0 0
        %1022 = vmatprep.subr.bf16.mxu0 0
        %1023 = vmatpush1.bf16.xpose.msra.mxu0 0
        %1024 = vmatprep.subr.bf16.mxu0 0
        %1025 = vmatpush1.bf16.xpose.msra.mxu0 0
        %1026 = vmatprep.subr.bf16.mxu0 0
        %1027 = vmatpush1.bf16.xpose.msra.mxu0 0
        %1028 = vmatprep.subr.bf16.mxu0 0
        %1029 = vmatpush1.bf16.xpose.msra.mxu0 0
        %1030 = vmatprep.subr.bf16.mxu0 0
        %1031 = vmatpush1.bf16.xpose.msra.mxu0 0
        %1032 = vmatprep.subr.bf16.mxu0 0
        %1033 = vmatpush1.bf16.xpose.msra.mxu0 0
        %1034 = vmatprep.subr.bf16.mxu0 0
        %1035 = vmatpush1.bf16.xpose.msra.mxu0 0
        %1036 = vmatprep.subr.bf16.mxu0 0
        %1037 = vmatpush1.bf16.xpose.msra.mxu0 0
        %1038 = vmatprep.subr.bf16.mxu0 0
        %1039 = vmatpush1.bf16.xpose.msra.mxu0 0
        %1040 = vmatprep.mubr.bf16.mxu0 0
        %1041 = vmatmul.mubr.bf16.gmra.mrb[0].mxu0 %v1003
        %v1042 = vpop.f32.mrb[0].mxu0
        %v1043 = vadd.f32 0.0, %v1042
        %v1044 = vpop.f32.mrb[0].mxu0
        %v1045 = vpop.f32.mrb[0].mxu0
        %v1046 = vpop.f32.mrb[0].mxu0
        %1047 = vdwg.mxu0
        %v1048 = vmul.f32 %v1043, 0.35355338
        %v1049 = vsel %vm610, %v1048, -inf
        %1050 = vmax.xlane.f32.xlu0 %v1049
        %v1051 = vpop.xlane.xlu0 %1050
        %v1052 = vsub.f32 %v1048, %v1051
        %v1053 = vmul.f32 %v1052, 1.442695
        %v1054 = vpow.pop %v1053
        %v1055 = vsel %vm610, %v1054, 0.0
        %1056 = vadd.xlane.f32.xlu0 %v1055
        %v1057 = vpop.xlane.xlu0 %1056
        %v1058 = vrcp.pop %v1057
        %v1059 = vmul.f32 %v1054, %v1058
        %v1060 = vmul.f32 %v411, %v1059
        %v1061 = vsel %vm610, %v1060, 0.0
        %1062 = vadd.xlane.f32.xlu0 %v1061
        %v1063 = vpop.xlane.xlu0 %1062
        %v1064 = vrot.slane %v1063, 4
        %v1065 = vadd.f32 %v1063, %v1064
        %v1066 = vrot.slane %v1065, 2
        %v1067 = vadd.f32 %v1065, %v1066
        %v1068 = vrot.slane %v1067, 1
        %v1069 = vadd.f32 %v1067, %v1068
        %s1070 = vtos %v1069
        %s1071 = smul.f32 %s1070, 0.015625
        %v1072 = vmul.f32 %v1060, %v1060
        %v1073 = vsel %vm610, %v1072, 0.0
        %1074 = vadd.xlane.f32.xlu0 %v1073
        %v1075 = vpop.xlane.xlu0 %1074
        %v1076 = vrot.slane %v1075, 4
        %v1077 = vadd.f32 %v1075, %v1076
        %v1078 = vrot.slane %v1077, 2
        %v1079 = vadd.f32 %v1077, %v1078
        %v1080 = vrot.slane %v1079, 1
        %v1081 = vadd.f32 %v1079, %v1080
        %s1082 = vtos %v1081
        %s1083 = smul.f32 %s1082, 0.015625
        %s1084 = smul.f32 %s1071, %s1071
        %s1085 = ssub.f32 %s1083, %s1084
        %v1086 = vstv %s1071
        %v1087 = vsub.f32 %v1060, %v1086
        %s1088 = sadd.f32 %s1085, 1e-05
        %v1089 = vstv %s1088
        %v1090 = vrsqrt.pop %v1089
        %s1091 = vtos %v1090
        %v1092 = vstv %s1091
        %v1093 = vmul.f32 %v1087, %v1092
        %v1094 = vmul.f32 %v1093, %v412
        %v1095 = vadd.f32 %v1094, %v413
        %v1096 = vpack.c.bf16 %v1095, %v1095
        %v1097 = vpack.c.bf16 %v995, %v995
        %v1099 = vsel %vm610, %v1096, 0
        %v1102 = vsel %vm710, %v1097, 0
        %1104 = vmatprep.subr.bf16.mxu0 0
        %1105 = vmatpush1.bf16.msra.mxu0 %v1102
        %1106 = vmatprep.subr.bf16.mxu0 0
        %1107 = vmatpush1.bf16.msra.mxu0 0
        %1108 = vmatprep.subr.bf16.mxu0 0
        %1109 = vmatpush1.bf16.msra.mxu0 0
        %1110 = vmatprep.subr.bf16.mxu0 0
        %1111 = vmatpush1.bf16.msra.mxu0 0
        %1112 = vmatprep.subr.bf16.mxu0 0
        %1113 = vmatpush1.bf16.msra.mxu0 0
        %1114 = vmatprep.subr.bf16.mxu0 0
        %1115 = vmatpush1.bf16.msra.mxu0 0
        %1116 = vmatprep.subr.bf16.mxu0 0
        %1117 = vmatpush1.bf16.msra.mxu0 0
        %1118 = vmatprep.subr.bf16.mxu0 0
        %1119 = vmatpush1.bf16.msra.mxu0 0
        %1120 = vmatprep.subr.bf16.mxu0 0
        %1121 = vmatpush1.bf16.msra.mxu0 0
        %1122 = vmatprep.subr.bf16.mxu0 0
        %1123 = vmatpush1.bf16.msra.mxu0 0
        %1124 = vmatprep.subr.bf16.mxu0 0
        %1125 = vmatpush1.bf16.msra.mxu0 0
        %1126 = vmatprep.subr.bf16.mxu0 0
        %1127 = vmatpush1.bf16.msra.mxu0 0
        %1128 = vmatprep.subr.bf16.mxu0 0
        %1129 = vmatpush1.bf16.msra.mxu0 0
        %1130 = vmatprep.subr.bf16.mxu0 0
        %1131 = vmatpush1.bf16.msra.mxu0 0
        %1132 = vmatprep.subr.bf16.mxu0 0
        %1133 = vmatpush1.bf16.msra.mxu0 0
        %1134 = vmatprep.subr.bf16.mxu0 0
        %1135 = vmatpush1.bf16.msra.mxu0 0
        %1136 = vmatprep.mubr.bf16.mxu0 0
        %1137 = vmatmul.mubr.bf16.gmra.mrb[0].mxu0 %v1099
        %v1138 = vpop.f32.mrb[0].mxu0
        %v1139 = vadd.f32 0.0, %v1138
        %v1140 = vpop.f32.mrb[0].mxu0
        %v1141 = vpop.f32.mrb[0].mxu0
        %v1142 = vpop.f32.mrb[0].mxu0
        %1143 = vdwg.mxu0
        %v1144 = vld [vmem:[#allocation2] sm:$0xff]
        %v1145 = vpack.c.bf16 %v1139, %v1139
        %s1146 = scalar_lea.vmem %s7, 4
        %v1147 = vld [vmem:[%s1146] sm:$0xf]
        %v1149 = vsel %vm610, %v1145, 0
        %v1152 = vsel %vm710, %v1147, 0
        %1154 = vmatprep.subr.bf16.mxu0 0
        %1155 = vmatpush1.bf16.msra.mxu0 %v1152
        %1156 = vmatprep.subr.bf16.mxu0 0
        %1157 = vmatpush1.bf16.msra.mxu0 0
        %1158 = vmatprep.subr.bf16.mxu0 0
        %1159 = vmatpush1.bf16.msra.mxu0 0
        %1160 = vmatprep.subr.bf16.mxu0 0
        %1161 = vmatpush1.bf16.msra.mxu0 0
        %1162 = vmatprep.subr.bf16.mxu0 0
        %1163 = vmatpush1.bf16.msra.mxu0 0
        %1164 = vmatprep.subr.bf16.mxu0 0
        %1165 = vmatpush1.bf16.msra.mxu0 0
        %1166 = vmatprep.subr.bf16.mxu0 0
        %1167 = vmatpush1.bf16.msra.mxu0 0
        %1168 = vmatprep.subr.bf16.mxu0 0
        %1169 = vmatpush1.bf16.msra.mxu0 0
        %1170 = vmatprep.subr.bf16.mxu0 0
        %1171 = vmatpush1.bf16.msra.mxu0 0
        %1172 = vmatprep.subr.bf16.mxu0 0
        %1173 = vmatpush1.bf16.msra.mxu0 0
        %1174 = vmatprep.subr.bf16.mxu0 0
        %1175 = vmatpush1.bf16.msra.mxu0 0
        %1176 = vmatprep.subr.bf16.mxu0 0
        %1177 = vmatpush1.bf16.msra.mxu0 0
        %1178 = vmatprep.subr.bf16.mxu0 0
        %1179 = vmatpush1.bf16.msra.mxu0 0
        %1180 = vmatprep.subr.bf16.mxu0 0
        %1181 = vmatpush1.bf16.msra.mxu0 0
        %1182 = vmatprep.subr.bf16.mxu0 0
        %1183 = vmatpush1.bf16.msra.mxu0 0
        %1184 = vmatprep.subr.bf16.mxu0 0
        %1185 = vmatpush1.bf16.msra.mxu0 0
        %1186 = vmatprep.mubr.bf16.mxu0 0
        %1187 = vmatmul.mubr.bf16.gmra.mrb[0].mxu0 %v1149
        %v1188 = vpop.f32.mrb[0].mxu0
        %v1189 = vadd.f32 0.0, %v1188
        %v1190 = vpop.f32.mrb[0].mxu0
        %v1191 = vpop.f32.mrb[0].mxu0
        %v1192 = vpop.f32.mrb[0].mxu0
        %1193 = vdwg.mxu0
        %v1194 = vadd.f32 %v1144, %v1189
        %1195 = vst.msk [vmem:[#allocation2] sm:$0xff] %vm414, %v1194
        %s1196 = scalar_lea.vmem %s1, 32
        %v1197 = vld [vmem:[%s1196] sm:$0xf]
        %v1198 = vld [vmem:[%s1196 + $0x4] sm:$0xf]
        %v1199 = vld [vmem:[%s1196 + $0x8] sm:$0xf]
        %v1200 = vld [vmem:[%s1196 + $0xc] sm:$0xf]
        %s1201 = scalar_lea.vmem %s4, 2
        %v1202 = vld [vmem:[%s1201] sm:$0x1]
        %v1204 = vlaneseq
        %v1205 = vshrl.u32 %v1204, 7
        %v1206 = vsub.s32 0, %v1205
        %v1207 = vrot.slane %v1202, %v1206
        %v1213 = vunpack.c.l.b16 %v1197
        %v1214 = vunpack.c.l.b16 %v1198
        %v1215 = vunpack.c.l.b16 %v1199
        %v1216 = vunpack.c.l.b16 %v1200
        %v1217 = vpack.c.b16 %v1214, %v1213
        %v1218 = vpack.c.b16 %v1216, %v1215
        %1221 = vmatprep.subr.bf16.mxu0 0
        %1222 = vmatpush1.bf16.msra.mxu0 %v1217
        %1223 = vmatprep.subr.bf16.mxu0 0
        %1224 = vmatpush1.bf16.msra.mxu0 %v1218
        %1225 = vmatprep.subr.bf16.mxu0 0
        %1226 = vmatpush1.bf16.msra.mxu0 0
        %1227 = vmatprep.subr.bf16.mxu0 0
        %1228 = vmatpush1.bf16.msra.mxu0 0
        %1229 = vmatprep.subr.bf16.mxu0 0
        %1230 = vmatpush1.bf16.msra.mxu0 0
        %1231 = vmatprep.subr.bf16.mxu0 0
        %1232 = vmatpush1.bf16.msra.mxu0 0
        %1233 = vmatprep.subr.bf16.mxu0 0
        %1234 = vmatpush1.bf16.msra.mxu0 0
        %1235 = vmatprep.subr.bf16.mxu0 0
        %1236 = vmatpush1.bf16.msra.mxu0 0
        %1237 = vmatprep.subr.bf16.mxu0 0
        %1238 = vmatpush1.bf16.msra.mxu0 0
        %1239 = vmatprep.subr.bf16.mxu0 0
        %1240 = vmatpush1.bf16.msra.mxu0 0
        %1241 = vmatprep.subr.bf16.mxu0 0
        %1242 = vmatpush1.bf16.msra.mxu0 0
        %1243 = vmatprep.subr.bf16.mxu0 0
        %1244 = vmatpush1.bf16.msra.mxu0 0
        %1245 = vmatprep.subr.bf16.mxu0 0
        %1246 = vmatpush1.bf16.msra.mxu0 0
        %1247 = vmatprep.subr.bf16.mxu0 0
        %1248 = vmatpush1.bf16.msra.mxu0 0
        %1249 = vmatprep.subr.bf16.mxu0 0
        %1250 = vmatpush1.bf16.msra.mxu0 0
        %1251 = vmatprep.subr.bf16.mxu0 0
        %1252 = vmatpush1.bf16.msra.mxu0 0
        %1253 = vmatprep.mubr.bf16.mxu0 0
        %1254 = vmatmul.mubr.bf16.gmra.mrb[0].mxu0 %v440
        %v1255 = vpop.f32.mrb[0].mxu0
        %v1256 = vadd.f32 %v1207, %v1255
        %v1257 = vpop.f32.mrb[0].mxu0
        %v1258 = vpop.f32.mrb[0].mxu0
        %v1259 = vpop.f32.mrb[0].mxu0
        %1260 = vdwg.mxu0
        %s1261 = scalar_lea.vmem %s2, 32
        %v1262 = vld [vmem:[%s1261] sm:$0xf]
        %v1263 = vld [vmem:[%s1261 + $0x4] sm:$0xf]
        %v1264 = vld [vmem:[%s1261 + $0x8] sm:$0xf]
        %v1265 = vld [vmem:[%s1261 + $0xc] sm:$0xf]
        %s1266 = scalar_lea.vmem %s5, 2
        %v1267 = vld [vmem:[%s1266] sm:$0x1]
        %v1269 = vlaneseq
        %v1270 = vshrl.u32 %v1269, 7
        %v1271 = vsub.s32 0, %v1270
        %v1272 = vrot.slane %v1267, %v1271
        %v1278 = vunpack.c.l.b16 %v1262
        %v1279 = vunpack.c.l.b16 %v1263
        %v1280 = vunpack.c.l.b16 %v1264
        %v1281 = vunpack.c.l.b16 %v1265
        %v1282 = vpack.c.b16 %v1279, %v1278
        %v1283 = vpack.c.b16 %v1281, %v1280
        %1286 = vmatprep.subr.bf16.mxu0 0
        %1287 = vmatpush1.bf16.msra.mxu0 %v1282
        %1288 = vmatprep.subr.bf16.mxu0 0
        %1289 = vmatpush1.bf16.msra.mxu0 %v1283
        %1290 = vmatprep.subr.bf16.mxu0 0
        %1291 = vmatpush1.bf16.msra.mxu0 0
        %1292 = vmatprep.subr.bf16.mxu0 0
        %1293 = vmatpush1.bf16.msra.mxu0 0
        %1294 = vmatprep.subr.bf16.mxu0 0
        %1295 = vmatpush1.bf16.msra.mxu0 0
        %1296 = vmatprep.subr.bf16.mxu0 0
        %1297 = vmatpush1.bf16.msra.mxu0 0
        %1298 = vmatprep.subr.bf16.mxu0 0
        %1299 = vmatpush1.bf16.msra.mxu0 0
        %1300 = vmatprep.subr.bf16.mxu0 0
        %1301 = vmatpush1.bf16.msra.mxu0 0
        %1302 = vmatprep.subr.bf16.mxu0 0
        %1303 = vmatpush1.bf16.msra.mxu0 0
        %1304 = vmatprep.subr.bf16.mxu0 0
        %1305 = vmatpush1.bf16.msra.mxu0 0
        %1306 = vmatprep.subr.bf16.mxu0 0
        %1307 = vmatpush1.bf16.msra.mxu0 0
        %1308 = vmatprep.subr.bf16.mxu0 0
        %1309 = vmatpush1.bf16.msra.mxu0 0
        %1310 = vmatprep.subr.bf16.mxu0 0
        %1311 = vmatpush1.bf16.msra.mxu0 0
        %1312 = vmatprep.subr.bf16.mxu0 0
        %1313 = vmatpush1.bf16.msra.mxu0 0
        %1314 = vmatprep.subr.bf16.mxu0 0
        %1315 = vmatpush1.bf16.msra.mxu0 0
        %1316 = vmatprep.subr.bf16.mxu0 0
        %1317 = vmatpush1.bf16.msra.mxu0 0
        %1318 = vmatprep.mubr.bf16.mxu0 0
        %1319 = vmatmul.mubr.bf16.gmra.mrb[0].mxu0 %v440
        %v1320 = vpop.f32.mrb[0].mxu0
        %v1321 = vadd.f32 %v1272, %v1320
        %v1322 = vpop.f32.mrb[0].mxu0
        %v1323 = vpop.f32.mrb[0].mxu0
        %v1324 = vpop.f32.mrb[0].mxu0
        %1325 = vdwg.mxu0
        %s1326 = scalar_lea.vmem %s3, 32
        %v1327 = vld [vmem:[%s1326] sm:$0xf]
        %v1328 = vld [vmem:[%s1326 + $0x4] sm:$0xf]
        %v1329 = vld [vmem:[%s1326 + $0x8] sm:$0xf]
        %v1330 = vld [vmem:[%s1326 + $0xc] sm:$0xf]
        %s1331 = scalar_lea.vmem %s6, 2
        %v1332 = vld [vmem:[%s1331] sm:$0x1]
        %v1334 = vlaneseq
        %v1335 = vshrl.u32 %v1334, 7
        %v1336 = vsub.s32 0, %v1335
        %v1337 = vrot.slane %v1332, %v1336
        %v1343 = vunpack.c.l.b16 %v1327
        %v1344 = vunpack.c.l.b16 %v1328
        %v1345 = vunpack.c.l.b16 %v1329
        %v1346 = vunpack.c.l.b16 %v1330
        %v1347 = vpack.c.b16 %v1344, %v1343
        %v1348 = vpack.c.b16 %v1346, %v1345
        %1351 = vmatprep.subr.bf16.mxu0 0
        %1352 = vmatpush1.bf16.msra.mxu0 %v1347
        %1353 = vmatprep.subr.bf16.mxu0 0
        %1354 = vmatpush1.bf16.msra.mxu0 %v1348
        %1355 = vmatprep.subr.bf16.mxu0 0
        %1356 = vmatpush1.bf16.msra.mxu0 0
        %1357 = vmatprep.subr.bf16.mxu0 0
        %1358 = vmatpush1.bf16.msra.mxu0 0
        %1359 = vmatprep.subr.bf16.mxu0 0
        %1360 = vmatpush1.bf16.msra.mxu0 0
        %1361 = vmatprep.subr.bf16.mxu0 0
        %1362 = vmatpush1.bf16.msra.mxu0 0
        %1363 = vmatprep.subr.bf16.mxu0 0
        %1364 = vmatpush1.bf16.msra.mxu0 0
        %1365 = vmatprep.subr.bf16.mxu0 0
        %1366 = vmatpush1.bf16.msra.mxu0 0
        %1367 = vmatprep.subr.bf16.mxu0 0
        %1368 = vmatpush1.bf16.msra.mxu0 0
        %1369 = vmatprep.subr.bf16.mxu0 0
        %1370 = vmatpush1.bf16.msra.mxu0 0
        %1371 = vmatprep.subr.bf16.mxu0 0
        %1372 = vmatpush1.bf16.msra.mxu0 0
        %1373 = vmatprep.subr.bf16.mxu0 0
        %1374 = vmatpush1.bf16.msra.mxu0 0
        %1375 = vmatprep.subr.bf16.mxu0 0
        %1376 = vmatpush1.bf16.msra.mxu0 0
        %1377 = vmatprep.subr.bf16.mxu0 0
        %1378 = vmatpush1.bf16.msra.mxu0 0
        %1379 = vmatprep.subr.bf16.mxu0 0
        %1380 = vmatpush1.bf16.msra.mxu0 0
        %1381 = vmatprep.subr.bf16.mxu0 0
        %1382 = vmatpush1.bf16.msra.mxu0 0
        %1383 = vmatprep.mubr.bf16.mxu0 0
        %1384 = vmatmul.mubr.bf16.gmra.mrb[0].mxu0 %v440
        %v1385 = vpop.f32.mrb[0].mxu0
        %v1386 = vadd.f32 %v1337, %v1385
        %v1387 = vpop.f32.mrb[0].mxu0
        %v1388 = vpop.f32.mrb[0].mxu0
        %v1389 = vpop.f32.mrb[0].mxu0
        %1390 = vdwg.mxu0
        %v1391 = vpack.c.bf16 %v1256, %v1256
        %v1392 = vpack.c.bf16 %v1321, %v1321
        %v1394 = vsel %vm610, %v1391, 0
        %v1397 = vsel %vm610, %v1392, 0
        %1399 = vmatprep.subr.bf16.mxu0 0
        %1400 = vmatpush1.bf16.xpose.msra.mxu0 %v1397
        %1401 = vmatprep.subr.bf16.mxu0 0
        %1402 = vmatpush1.bf16.xpose.msra.mxu0 0
        %1403 = vmatprep.subr.bf16.mxu0 0
        %1404 = vmatpush1.bf16.xpose.msra.mxu0 0
        %1405 = vmatprep.subr.bf16.mxu0 0
        %1406 = vmatpush1.bf16.xpose.msra.mxu0 0
        %1407 = vmatprep.subr.bf16.mxu0 0
        %1408 = vmatpush1.bf16.xpose.msra.mxu0 0
        %1409 = vmatprep.subr.bf16.mxu0 0
        %1410 = vmatpush1.bf16.xpose.msra.mxu0 0
        %1411 = vmatprep.subr.bf16.mxu0 0
        %1412 = vmatpush1.bf16.xpose.msra.mxu0 0
        %1413 = vmatprep.subr.bf16.mxu0 0
        %1414 = vmatpush1.bf16.xpose.msra.mxu0 0
        %1415 = vmatprep.subr.bf16.mxu0 0
        %1416 = vmatpush1.bf16.xpose.msra.mxu0 0
        %1417 = vmatprep.subr.bf16.mxu0 0
        %1418 = vmatpush1.bf16.xpose.msra.mxu0 0
        %1419 = vmatprep.subr.bf16.mxu0 0
        %1420 = vmatpush1.bf16.xpose.msra.mxu0 0
        %1421 = vmatprep.subr.bf16.mxu0 0
        %1422 = vmatpush1.bf16.xpose.msra.mxu0 0
        %1423 = vmatprep.subr.bf16.mxu0 0
        %1424 = vmatpush1.bf16.xpose.msra.mxu0 0
        %1425 = vmatprep.subr.bf16.mxu0 0
        %1426 = vmatpush1.bf16.xpose.msra.mxu0 0
        %1427 = vmatprep.subr.bf16.mxu0 0
        %1428 = vmatpush1.bf16.xpose.msra.mxu0 0
        %1429 = vmatprep.subr.bf16.mxu0 0
        %1430 = vmatpush1.bf16.xpose.msra.mxu0 0
        %1431 = vmatprep.mubr.bf16.mxu0 0
        %1432 = vmatmul.mubr.bf16.gmra.mrb[0].mxu0 %v1394
        %v1433 = vpop.f32.mrb[0].mxu0
        %v1434 = vadd.f32 0.0, %v1433
        %v1435 = vpop.f32.mrb[0].mxu0
        %v1436 = vpop.f32.mrb[0].mxu0
        %v1437 = vpop.f32.mrb[0].mxu0
        %1438 = vdwg.mxu0
        %v1439 = vmul.f32 %v1434, 0.35355338
        %v1440 = vsel %vm610, %v1439, -inf
        %1441 = vmax.xlane.f32.xlu0 %v1440
        %v1442 = vpop.xlane.xlu0 %1441
        %v1443 = vsub.f32 %v1439, %v1442
        %v1444 = vmul.f32 %v1443, 1.442695
        %v1445 = vpow.pop %v1444
        %v1446 = vsel %vm610, %v1445, 0.0
        %1447 = vadd.xlane.f32.xlu0 %v1446
        %v1448 = vpop.xlane.xlu0 %1447
        %v1449 = vrcp.pop %v1448
        %v1450 = vmul.f32 %v1445, %v1449
        %v1451 = vmul.f32 %v411, %v1450
        %v1452 = vsel %vm610, %v1451, 0.0
        %1453 = vadd.xlane.f32.xlu0 %v1452
        %v1454 = vpop.xlane.xlu0 %1453
        %v1455 = vrot.slane %v1454, 4
        %v1456 = vadd.f32 %v1454, %v1455
        %v1457 = vrot.slane %v1456, 2
        %v1458 = vadd.f32 %v1456, %v1457
        %v1459 = vrot.slane %v1458, 1
        %v1460 = vadd.f32 %v1458, %v1459
        %s1461 = vtos %v1460
        %s1462 = smul.f32 %s1461, 0.015625
        %v1463 = vmul.f32 %v1451, %v1451
        %v1464 = vsel %vm610, %v1463, 0.0
        %1465 = vadd.xlane.f32.xlu0 %v1464
        %v1466 = vpop.xlane.xlu0 %1465
        %v1467 = vrot.slane %v1466, 4
        %v1468 = vadd.f32 %v1466, %v1467
        %v1469 = vrot.slane %v1468, 2
        %v1470 = vadd.f32 %v1468, %v1469
        %v1471 = vrot.slane %v1470, 1
        %v1472 = vadd.f32 %v1470, %v1471
        %s1473 = vtos %v1472
        %s1474 = smul.f32 %s1473, 0.015625
        %s1475 = smul.f32 %s1462, %s1462
        %s1476 = ssub.f32 %s1474, %s1475
        %v1477 = vstv %s1462
        %v1478 = vsub.f32 %v1451, %v1477
        %s1479 = sadd.f32 %s1476, 1e-05
        %v1480 = vstv %s1479
        %v1481 = vrsqrt.pop %v1480
        %s1482 = vtos %v1481
        %v1483 = vstv %s1482
        %v1484 = vmul.f32 %v1478, %v1483
        %v1485 = vmul.f32 %v1484, %v412
        %v1486 = vadd.f32 %v1485, %v413
        %v1487 = vpack.c.bf16 %v1486, %v1486
        %v1488 = vpack.c.bf16 %v1386, %v1386
        %v1490 = vsel %vm610, %v1487, 0
        %v1493 = vsel %vm710, %v1488, 0
        %1495 = vmatprep.subr.bf16.mxu0 0
        %1496 = vmatpush1.bf16.msra.mxu0 %v1493
        %1497 = vmatprep.subr.bf16.mxu0 0
        %1498 = vmatpush1.bf16.msra.mxu0 0
        %1499 = vmatprep.subr.bf16.mxu0 0
        %1500 = vmatpush1.bf16.msra.mxu0 0
        %1501 = vmatprep.subr.bf16.mxu0 0
        %1502 = vmatpush1.bf16.msra.mxu0 0
        %1503 = vmatprep.subr.bf16.mxu0 0
        %1504 = vmatpush1.bf16.msra.mxu0 0
        %1505 = vmatprep.subr.bf16.mxu0 0
        %1506 = vmatpush1.bf16.msra.mxu0 0
        %1507 = vmatprep.subr.bf16.mxu0 0
        %1508 = vmatpush1.bf16.msra.mxu0 0
        %1509 = vmatprep.subr.bf16.mxu0 0
        %1510 = vmatpush1.bf16.msra.mxu0 0
        %1511 = vmatprep.subr.bf16.mxu0 0
        %1512 = vmatpush1.bf16.msra.mxu0 0
        %1513 = vmatprep.subr.bf16.mxu0 0
        %1514 = vmatpush1.bf16.msra.mxu0 0
        %1515 = vmatprep.subr.bf16.mxu0 0
        %1516 = vmatpush1.bf16.msra.mxu0 0
        %1517 = vmatprep.subr.bf16.mxu0 0
        %1518 = vmatpush1.bf16.msra.mxu0 0
        %1519 = vmatprep.subr.bf16.mxu0 0
        %1520 = vmatpush1.bf16.msra.mxu0 0
        %1521 = vmatprep.subr.bf16.mxu0 0
        %1522 = vmatpush1.bf16.msra.mxu0 0
        %1523 = vmatprep.subr.bf16.mxu0 0
        %1524 = vmatpush1.bf16.msra.mxu0 0
        %1525 = vmatprep.subr.bf16.mxu0 0
        %1526 = vmatpush1.bf16.msra.mxu0 0
        %1527 = vmatprep.mubr.bf16.mxu0 0
        %1528 = vmatmul.mubr.bf16.gmra.mrb[0].mxu0 %v1490
        %v1529 = vpop.f32.mrb[0].mxu0
        %v1530 = vadd.f32 0.0, %v1529
        %v1531 = vpop.f32.mrb[0].mxu0
        %v1532 = vpop.f32.mrb[0].mxu0
        %v1533 = vpop.f32.mrb[0].mxu0
        %1534 = vdwg.mxu0
        %v1535 = vld [vmem:[#allocation2] sm:$0xff]
        %v1536 = vpack.c.bf16 %v1530, %v1530
        %s1537 = scalar_lea.vmem %s7, 8
        %v1538 = vld [vmem:[%s1537] sm:$0xf]
        %v1540 = vsel %vm610, %v1536, 0
        %v1543 = vsel %vm710, %v1538, 0
        %1545 = vmatprep.subr.bf16.mxu0 0
        %1546 = vmatpush1.bf16.msra.mxu0 %v1543
        %1547 = vmatprep.subr.bf16.mxu0 0
        %1548 = vmatpush1.bf16.msra.mxu0 0
        %1549 = vmatprep.subr.bf16.mxu0 0
        %1550 = vmatpush1.bf16.msra.mxu0 0
        %1551 = vmatprep.subr.bf16.mxu0 0
        %1552 = vmatpush1.bf16.msra.mxu0 0
        %1553 = vmatprep.subr.bf16.mxu0 0
        %1554 = vmatpush1.bf16.msra.mxu0 0
        %1555 = vmatprep.subr.bf16.mxu0 0
        %1556 = vmatpush1.bf16.msra.mxu0 0
        %1557 = vmatprep.subr.bf16.mxu0 0
        %1558 = vmatpush1.bf16.msra.mxu0 0
        %1559 = vmatprep.subr.bf16.mxu0 0
        %1560 = vmatpush1.bf16.msra.mxu0 0
        %1561 = vmatprep.subr.bf16.mxu0 0
        %1562 = vmatpush1.bf16.msra.mxu0 0
        %1563 = vmatprep.subr.bf16.mxu0 0
        %1564 = vmatpush1.bf16.msra.mxu0 0
        %1565 = vmatprep.subr.bf16.mxu0 0
        %1566 = vmatpush1.bf16.msra.mxu0 0
        %1567 = vmatprep.subr.bf16.mxu0 0
        %1568 = vmatpush1.bf16.msra.mxu0 0
        %1569 = vmatprep.subr.bf16.mxu0 0
        %1570 = vmatpush1.bf16.msra.mxu0 0
        %1571 = vmatprep.subr.bf16.mxu0 0
        %1572 = vmatpush1.bf16.msra.mxu0 0
        %1573 = vmatprep.subr.bf16.mxu0 0
        %1574 = vmatpush1.bf16.msra.mxu0 0
        %1575 = vmatprep.subr.bf16.mxu0 0
        %1576 = vmatpush1.bf16.msra.mxu0 0
        %1577 = vmatprep.mubr.bf16.mxu0 0
        %1578 = vmatmul.mubr.bf16.gmra.mrb[0].mxu0 %v1540
        %v1579 = vpop.f32.mrb[0].mxu0
        %v1580 = vadd.f32 0.0, %v1579
        %v1581 = vpop.f32.mrb[0].mxu0
        %v1582 = vpop.f32.mrb[0].mxu0
        %v1583 = vpop.f32.mrb[0].mxu0
        %1584 = vdwg.mxu0
        %v1585 = vadd.f32 %v1535, %v1580
        %1586 = vst.msk [vmem:[#allocation2] sm:$0xff] %vm414, %v1585
        %s1587 = scalar_lea.vmem %s1, 48
        %v1588 = vld [vmem:[%s1587] sm:$0xf]
        %v1589 = vld [vmem:[%s1587 + $0x4] sm:$0xf]
        %v1590 = vld [vmem:[%s1587 + $0x8] sm:$0xf]
        %v1591 = vld [vmem:[%s1587 + $0xc] sm:$0xf]
        %s1592 = scalar_lea.vmem %s4, 3
        %v1593 = vld [vmem:[%s1592] sm:$0x1]
        %v1595 = vlaneseq
        %v1596 = vshrl.u32 %v1595, 7
        %v1597 = vsub.s32 0, %v1596
        %v1598 = vrot.slane %v1593, %v1597
        %v1604 = vunpack.c.l.b16 %v1588
        %v1605 = vunpack.c.l.b16 %v1589
        %v1606 = vunpack.c.l.b16 %v1590
        %v1607 = vunpack.c.l.b16 %v1591
        %v1608 = vpack.c.b16 %v1605, %v1604
        %v1609 = vpack.c.b16 %v1607, %v1606
        %1612 = vmatprep.subr.bf16.mxu0 0
        %1613 = vmatpush1.bf16.msra.mxu0 %v1608
        %1614 = vmatprep.subr.bf16.mxu0 0
        %1615 = vmatpush1.bf16.msra.mxu0 %v1609
        %1616 = vmatprep.subr.bf16.mxu0 0
        %1617 = vmatpush1.bf16.msra.mxu0 0
        %1618 = vmatprep.subr.bf16.mxu0 0
        %1619 = vmatpush1.bf16.msra.mxu0 0
        %1620 = vmatprep.subr.bf16.mxu0 0
        %1621 = vmatpush1.bf16.msra.mxu0 0
        %1622 = vmatprep.subr.bf16.mxu0 0
        %1623 = vmatpush1.bf16.msra.mxu0 0
        %1624 = vmatprep.subr.bf16.mxu0 0
        %1625 = vmatpush1.bf16.msra.mxu0 0
        %1626 = vmatprep.subr.bf16.mxu0 0
        %1627 = vmatpush1.bf16.msra.mxu0 0
        %1628 = vmatprep.subr.bf16.mxu0 0
        %1629 = vmatpush1.bf16.msra.mxu0 0
        %1630 = vmatprep.subr.bf16.mxu0 0
        %1631 = vmatpush1.bf16.msra.mxu0 0
        %1632 = vmatprep.subr.bf16.mxu0 0
        %1633 = vmatpush1.bf16.msra.mxu0 0
        %1634 = vmatprep.subr.bf16.mxu0 0
        %1635 = vmatpush1.bf16.msra.mxu0 0
        %1636 = vmatprep.subr.bf16.mxu0 0
        %1637 = vmatpush1.bf16.msra.mxu0 0
        %1638 = vmatprep.subr.bf16.mxu0 0
        %1639 = vmatpush1.bf16.msra.mxu0 0
        %1640 = vmatprep.subr.bf16.mxu0 0
        %1641 = vmatpush1.bf16.msra.mxu0 0
        %1642 = vmatprep.subr.bf16.mxu0 0
        %1643 = vmatpush1.bf16.msra.mxu0 0
        %1644 = vmatprep.mubr.bf16.mxu0 0
        %1645 = vmatmul.mubr.bf16.gmra.mrb[0].mxu0 %v440
        %v1646 = vpop.f32.mrb[0].mxu0
        %v1647 = vadd.f32 %v1598, %v1646
        %v1648 = vpop.f32.mrb[0].mxu0
        %v1649 = vpop.f32.mrb[0].mxu0
        %v1650 = vpop.f32.mrb[0].mxu0
        %1651 = vdwg.mxu0
        %s1652 = scalar_lea.vmem %s2, 48
        %v1653 = vld [vmem:[%s1652] sm:$0xf]
        %v1654 = vld [vmem:[%s1652 + $0x4] sm:$0xf]
        %v1655 = vld [vmem:[%s1652 + $0x8] sm:$0xf]
        %v1656 = vld [vmem:[%s1652 + $0xc] sm:$0xf]
        %s1657 = scalar_lea.vmem %s5, 3
        %v1658 = vld [vmem:[%s1657] sm:$0x1]
        %v1660 = vlaneseq
        %v1661 = vshrl.u32 %v1660, 7
        %v1662 = vsub.s32 0, %v1661
        %v1663 = vrot.slane %v1658, %v1662
        %v1669 = vunpack.c.l.b16 %v1653
        %v1670 = vunpack.c.l.b16 %v1654
        %v1671 = vunpack.c.l.b16 %v1655
        %v1672 = vunpack.c.l.b16 %v1656
        %v1673 = vpack.c.b16 %v1670, %v1669
        %v1674 = vpack.c.b16 %v1672, %v1671
        %1677 = vmatprep.subr.bf16.mxu0 0
        %1678 = vmatpush1.bf16.msra.mxu0 %v1673
        %1679 = vmatprep.subr.bf16.mxu0 0
        %1680 = vmatpush1.bf16.msra.mxu0 %v1674
        %1681 = vmatprep.subr.bf16.mxu0 0
        %1682 = vmatpush1.bf16.msra.mxu0 0
        %1683 = vmatprep.subr.bf16.mxu0 0
        %1684 = vmatpush1.bf16.msra.mxu0 0
        %1685 = vmatprep.subr.bf16.mxu0 0
        %1686 = vmatpush1.bf16.msra.mxu0 0
        %1687 = vmatprep.subr.bf16.mxu0 0
        %1688 = vmatpush1.bf16.msra.mxu0 0
        %1689 = vmatprep.subr.bf16.mxu0 0
        %1690 = vmatpush1.bf16.msra.mxu0 0
        %1691 = vmatprep.subr.bf16.mxu0 0
        %1692 = vmatpush1.bf16.msra.mxu0 0
        %1693 = vmatprep.subr.bf16.mxu0 0
        %1694 = vmatpush1.bf16.msra.mxu0 0
        %1695 = vmatprep.subr.bf16.mxu0 0
        %1696 = vmatpush1.bf16.msra.mxu0 0
        %1697 = vmatprep.subr.bf16.mxu0 0
        %1698 = vmatpush1.bf16.msra.mxu0 0
        %1699 = vmatprep.subr.bf16.mxu0 0
        %1700 = vmatpush1.bf16.msra.mxu0 0
        %1701 = vmatprep.subr.bf16.mxu0 0
        %1702 = vmatpush1.bf16.msra.mxu0 0
        %1703 = vmatprep.subr.bf16.mxu0 0
        %1704 = vmatpush1.bf16.msra.mxu0 0
        %1705 = vmatprep.subr.bf16.mxu0 0
        %1706 = vmatpush1.bf16.msra.mxu0 0
        %1707 = vmatprep.subr.bf16.mxu0 0
        %1708 = vmatpush1.bf16.msra.mxu0 0
        %1709 = vmatprep.mubr.bf16.mxu0 0
        %1710 = vmatmul.mubr.bf16.gmra.mrb[0].mxu0 %v440
        %v1711 = vpop.f32.mrb[0].mxu0
        %v1712 = vadd.f32 %v1663, %v1711
        %v1713 = vpop.f32.mrb[0].mxu0
        %v1714 = vpop.f32.mrb[0].mxu0
        %v1715 = vpop.f32.mrb[0].mxu0
        %1716 = vdwg.mxu0
        %s1717 = scalar_lea.vmem %s3, 48
        %v1718 = vld [vmem:[%s1717] sm:$0xf]
        %v1719 = vld [vmem:[%s1717 + $0x4] sm:$0xf]
        %v1720 = vld [vmem:[%s1717 + $0x8] sm:$0xf]
        %v1721 = vld [vmem:[%s1717 + $0xc] sm:$0xf]
        %s1722 = scalar_lea.vmem %s6, 3
        %v1723 = vld [vmem:[%s1722] sm:$0x1]
        %v1725 = vlaneseq
        %v1726 = vshrl.u32 %v1725, 7
        %v1727 = vsub.s32 0, %v1726
        %v1728 = vrot.slane %v1723, %v1727
        %v1734 = vunpack.c.l.b16 %v1718
        %v1735 = vunpack.c.l.b16 %v1719
        %v1736 = vunpack.c.l.b16 %v1720
        %v1737 = vunpack.c.l.b16 %v1721
        %v1738 = vpack.c.b16 %v1735, %v1734
        %v1739 = vpack.c.b16 %v1737, %v1736
        %1742 = vmatprep.subr.bf16.mxu0 0
        %1743 = vmatpush1.bf16.msra.mxu0 %v1738
        %1744 = vmatprep.subr.bf16.mxu0 0
        %1745 = vmatpush1.bf16.msra.mxu0 %v1739
        %1746 = vmatprep.subr.bf16.mxu0 0
        %1747 = vmatpush1.bf16.msra.mxu0 0
        %1748 = vmatprep.subr.bf16.mxu0 0
        %1749 = vmatpush1.bf16.msra.mxu0 0
        %1750 = vmatprep.subr.bf16.mxu0 0
        %1751 = vmatpush1.bf16.msra.mxu0 0
        %1752 = vmatprep.subr.bf16.mxu0 0
        %1753 = vmatpush1.bf16.msra.mxu0 0
        %1754 = vmatprep.subr.bf16.mxu0 0
        %1755 = vmatpush1.bf16.msra.mxu0 0
        %1756 = vmatprep.subr.bf16.mxu0 0
        %1757 = vmatpush1.bf16.msra.mxu0 0
        %1758 = vmatprep.subr.bf16.mxu0 0
        %1759 = vmatpush1.bf16.msra.mxu0 0
        %1760 = vmatprep.subr.bf16.mxu0 0
        %1761 = vmatpush1.bf16.msra.mxu0 0
        %1762 = vmatprep.subr.bf16.mxu0 0
        %1763 = vmatpush1.bf16.msra.mxu0 0
        %1764 = vmatprep.subr.bf16.mxu0 0
        %1765 = vmatpush1.bf16.msra.mxu0 0
        %1766 = vmatprep.subr.bf16.mxu0 0
        %1767 = vmatpush1.bf16.msra.mxu0 0
        %1768 = vmatprep.subr.bf16.mxu0 0
        %1769 = vmatpush1.bf16.msra.mxu0 0
        %1770 = vmatprep.subr.bf16.mxu0 0
        %1771 = vmatpush1.bf16.msra.mxu0 0
        %1772 = vmatprep.subr.bf16.mxu0 0
        %1773 = vmatpush1.bf16.msra.mxu0 0
        %1774 = vmatprep.mubr.bf16.mxu0 0
        %1775 = vmatmul.mubr.bf16.gmra.mrb[0].mxu0 %v440
        %v1776 = vpop.f32.mrb[0].mxu0
        %v1777 = vadd.f32 %v1728, %v1776
        %v1778 = vpop.f32.mrb[0].mxu0
        %v1779 = vpop.f32.mrb[0].mxu0
        %v1780 = vpop.f32.mrb[0].mxu0
        %1781 = vdwg.mxu0
        %v1782 = vpack.c.bf16 %v1647, %v1647
        %v1783 = vpack.c.bf16 %v1712, %v1712
        %v1785 = vsel %vm610, %v1782, 0
        %v1788 = vsel %vm610, %v1783, 0
        %1790 = vmatprep.subr.bf16.mxu0 0
        %1791 = vmatpush1.bf16.xpose.msra.mxu0 %v1788
        %1792 = vmatprep.subr.bf16.mxu0 0
        %1793 = vmatpush1.bf16.xpose.msra.mxu0 0
        %1794 = vmatprep.subr.bf16.mxu0 0
        %1795 = vmatpush1.bf16.xpose.msra.mxu0 0
        %1796 = vmatprep.subr.bf16.mxu0 0
        %1797 = vmatpush1.bf16.xpose.msra.mxu0 0
        %1798 = vmatprep.subr.bf16.mxu0 0
        %1799 = vmatpush1.bf16.xpose.msra.mxu0 0
        %1800 = vmatprep.subr.bf16.mxu0 0
        %1801 = vmatpush1.bf16.xpose.msra.mxu0 0
        %1802 = vmatprep.subr.bf16.mxu0 0
        %1803 = vmatpush1.bf16.xpose.msra.mxu0 0
        %1804 = vmatprep.subr.bf16.mxu0 0
        %1805 = vmatpush1.bf16.xpose.msra.mxu0 0
        %1806 = vmatprep.subr.bf16.mxu0 0
        %1807 = vmatpush1.bf16.xpose.msra.mxu0 0
        %1808 = vmatprep.subr.bf16.mxu0 0
        %1809 = vmatpush1.bf16.xpose.msra.mxu0 0
        %1810 = vmatprep.subr.bf16.mxu0 0
        %1811 = vmatpush1.bf16.xpose.msra.mxu0 0
        %1812 = vmatprep.subr.bf16.mxu0 0
        %1813 = vmatpush1.bf16.xpose.msra.mxu0 0
        %1814 = vmatprep.subr.bf16.mxu0 0
        %1815 = vmatpush1.bf16.xpose.msra.mxu0 0
        %1816 = vmatprep.subr.bf16.mxu0 0
        %1817 = vmatpush1.bf16.xpose.msra.mxu0 0
        %1818 = vmatprep.subr.bf16.mxu0 0
        %1819 = vmatpush1.bf16.xpose.msra.mxu0 0
        %1820 = vmatprep.subr.bf16.mxu0 0
        %1821 = vmatpush1.bf16.xpose.msra.mxu0 0
        %1822 = vmatprep.mubr.bf16.mxu0 0
        %1823 = vmatmul.mubr.bf16.gmra.mrb[0].mxu0 %v1785
        %v1824 = vpop.f32.mrb[0].mxu0
        %v1825 = vadd.f32 0.0, %v1824
        %v1826 = vpop.f32.mrb[0].mxu0
        %v1827 = vpop.f32.mrb[0].mxu0
        %v1828 = vpop.f32.mrb[0].mxu0
        %1829 = vdwg.mxu0
        %v1830 = vmul.f32 %v1825, 0.35355338
        %v1831 = vsel %vm610, %v1830, -inf
        %1832 = vmax.xlane.f32.xlu0 %v1831
        %v1833 = vpop.xlane.xlu0 %1832
        %v1834 = vsub.f32 %v1830, %v1833
        %v1835 = vmul.f32 %v1834, 1.442695
        %v1836 = vpow.pop %v1835
        %v1837 = vsel %vm610, %v1836, 0.0
        %1838 = vadd.xlane.f32.xlu0 %v1837
        %v1839 = vpop.xlane.xlu0 %1838
        %v1840 = vrcp.pop %v1839
        %v1841 = vmul.f32 %v1836, %v1840
        %v1842 = vmul.f32 %v411, %v1841
        %v1843 = vsel %vm610, %v1842, 0.0
        %1844 = vadd.xlane.f32.xlu0 %v1843
        %v1845 = vpop.xlane.xlu0 %1844
        %v1846 = vrot.slane %v1845, 4
        %v1847 = vadd.f32 %v1845, %v1846
        %v1848 = vrot.slane %v1847, 2
        %v1849 = vadd.f32 %v1847, %v1848
        %v1850 = vrot.slane %v1849, 1
        %v1851 = vadd.f32 %v1849, %v1850
        %s1852 = vtos %v1851
        %s1853 = smul.f32 %s1852, 0.015625
        %v1854 = vmul.f32 %v1842, %v1842
        %v1855 = vsel %vm610, %v1854, 0.0
        %1856 = vadd.xlane.f32.xlu0 %v1855
        %v1857 = vpop.xlane.xlu0 %1856
        %v1858 = vrot.slane %v1857, 4
        %v1859 = vadd.f32 %v1857, %v1858
        %v1860 = vrot.slane %v1859, 2
        %v1861 = vadd.f32 %v1859, %v1860
        %v1862 = vrot.slane %v1861, 1
        %v1863 = vadd.f32 %v1861, %v1862
        %s1864 = vtos %v1863
        %s1865 = smul.f32 %s1864, 0.015625
        %s1866 = smul.f32 %s1853, %s1853
        %s1867 = ssub.f32 %s1865, %s1866
        %v1868 = vstv %s1853
        %v1869 = vsub.f32 %v1842, %v1868
        %s1870 = sadd.f32 %s1867, 1e-05
        %v1871 = vstv %s1870
        %v1872 = vrsqrt.pop %v1871
        %s1873 = vtos %v1872
        %v1874 = vstv %s1873
        %v1875 = vmul.f32 %v1869, %v1874
        %v1876 = vmul.f32 %v1875, %v412
        %v1877 = vadd.f32 %v1876, %v413
        %v1878 = vpack.c.bf16 %v1877, %v1877
        %v1879 = vpack.c.bf16 %v1777, %v1777
        %v1881 = vsel %vm610, %v1878, 0
        %v1884 = vsel %vm710, %v1879, 0
        %1886 = vmatprep.subr.bf16.mxu0 0
        %1887 = vmatpush1.bf16.msra.mxu0 %v1884
        %1888 = vmatprep.subr.bf16.mxu0 0
        %1889 = vmatpush1.bf16.msra.mxu0 0
        %1890 = vmatprep.subr.bf16.mxu0 0
        %1891 = vmatpush1.bf16.msra.mxu0 0
        %1892 = vmatprep.subr.bf16.mxu0 0
        %1893 = vmatpush1.bf16.msra.mxu0 0
        %1894 = vmatprep.subr.bf16.mxu0 0
        %1895 = vmatpush1.bf16.msra.mxu0 0
        %1896 = vmatprep.subr.bf16.mxu0 0
        %1897 = vmatpush1.bf16.msra.mxu0 0
        %1898 = vmatprep.subr.bf16.mxu0 0
        %1899 = vmatpush1.bf16.msra.mxu0 0
        %1900 = vmatprep.subr.bf16.mxu0 0
        %1901 = vmatpush1.bf16.msra.mxu0 0
        %1902 = vmatprep.subr.bf16.mxu0 0
        %1903 = vmatpush1.bf16.msra.mxu0 0
        %1904 = vmatprep.subr.bf16.mxu0 0
        %1905 = vmatpush1.bf16.msra.mxu0 0
        %1906 = vmatprep.subr.bf16.mxu0 0
        %1907 = vmatpush1.bf16.msra.mxu0 0
        %1908 = vmatprep.subr.bf16.mxu0 0
        %1909 = vmatpush1.bf16.msra.mxu0 0
        %1910 = vmatprep.subr.bf16.mxu0 0
        %1911 = vmatpush1.bf16.msra.mxu0 0
        %1912 = vmatprep.subr.bf16.mxu0 0
        %1913 = vmatpush1.bf16.msra.mxu0 0
        %1914 = vmatprep.subr.bf16.mxu0 0
        %1915 = vmatpush1.bf16.msra.mxu0 0
        %1916 = vmatprep.subr.bf16.mxu0 0
        %1917 = vmatpush1.bf16.msra.mxu0 0
        %1918 = vmatprep.mubr.bf16.mxu0 0
        %1919 = vmatmul.mubr.bf16.gmra.mrb[0].mxu0 %v1881
        %v1920 = vpop.f32.mrb[0].mxu0
        %v1921 = vadd.f32 0.0, %v1920
        %v1922 = vpop.f32.mrb[0].mxu0
        %v1923 = vpop.f32.mrb[0].mxu0
        %v1924 = vpop.f32.mrb[0].mxu0
        %1925 = vdwg.mxu0
        %v1926 = vld [vmem:[#allocation2] sm:$0xff]
        %v1927 = vpack.c.bf16 %v1921, %v1921
        %s1928 = scalar_lea.vmem %s7, 12
        %v1929 = vld [vmem:[%s1928] sm:$0xf]
        %v1931 = vsel %vm610, %v1927, 0
        %v1934 = vsel %vm710, %v1929, 0
        %1936 = vmatprep.subr.bf16.mxu0 0
        %1937 = vmatpush1.bf16.msra.mxu0 %v1934
        %1938 = vmatprep.subr.bf16.mxu0 0
        %1939 = vmatpush1.bf16.msra.mxu0 0
        %1940 = vmatprep.subr.bf16.mxu0 0
        %1941 = vmatpush1.bf16.msra.mxu0 0
        %1942 = vmatprep.subr.bf16.mxu0 0
        %1943 = vmatpush1.bf16.msra.mxu0 0
        %1944 = vmatprep.subr.bf16.mxu0 0
        %1945 = vmatpush1.bf16.msra.mxu0 0
        %1946 = vmatprep.subr.bf16.mxu0 0
        %1947 = vmatpush1.bf16.msra.mxu0 0
        %1948 = vmatprep.subr.bf16.mxu0 0
        %1949 = vmatpush1.bf16.msra.mxu0 0
        %1950 = vmatprep.subr.bf16.mxu0 0
        %1951 = vmatpush1.bf16.msra.mxu0 0
        %1952 = vmatprep.subr.bf16.mxu0 0
        %1953 = vmatpush1.bf16.msra.mxu0 0
        %1954 = vmatprep.subr.bf16.mxu0 0
        %1955 = vmatpush1.bf16.msra.mxu0 0
        %1956 = vmatprep.subr.bf16.mxu0 0
        %1957 = vmatpush1.bf16.msra.mxu0 0
        %1958 = vmatprep.subr.bf16.mxu0 0
        %1959 = vmatpush1.bf16.msra.mxu0 0
        %1960 = vmatprep.subr.bf16.mxu0 0
        %1961 = vmatpush1.bf16.msra.mxu0 0
        %1962 = vmatprep.subr.bf16.mxu0 0
        %1963 = vmatpush1.bf16.msra.mxu0 0
        %1964 = vmatprep.subr.bf16.mxu0 0
        %1965 = vmatpush1.bf16.msra.mxu0 0
        %1966 = vmatprep.subr.bf16.mxu0 0
        %1967 = vmatpush1.bf16.msra.mxu0 0
        %1968 = vmatprep.mubr.bf16.mxu0 0
        %1969 = vmatmul.mubr.bf16.gmra.mrb[0].mxu0 %v1931
        %v1970 = vpop.f32.mrb[0].mxu0
        %v1971 = vadd.f32 0.0, %v1970
        %v1972 = vpop.f32.mrb[0].mxu0
        %v1973 = vpop.f32.mrb[0].mxu0
        %v1974 = vpop.f32.mrb[0].mxu0
        %1975 = vdwg.mxu0
        %v1976 = vadd.f32 %v1926, %v1971
        %1977 = vst.msk [vmem:[#allocation2] sm:$0xff] %vm414, %v1976
        %v1978 = vld [vmem:[#allocation2] sm:$0xff]
        %v1979 = vld [vmem:[%s8] sm:$0x1]
        %v1981 = vlaneseq
        %v1982 = vshrl.u32 %v1981, 7
        %v1983 = vsub.s32 0, %v1982
        %v1984 = vrot.slane %v1979, %v1983
        %v1986 = vadd.f32 %v1978, %v1984
        %1987 = vst.msk [vmem:[%s404] sm:$0xff] %vm414, %v1986
        %s1988 = sand.u32 %s291, 1
        %s1989 = scalar_lea.sflag [#allocation4], %s1988
        %s1990 = sand.u32 %s291, 1
        %s1991 = smul.addr %s1990, 8
        %s1992 = scalar_lea.vmem [#allocation3], %s1991
        // Predicated region
        $region69: #{tpu_custom_call.1} parent=67 // pred_check
          %p1993 = pneg %p301
        $region70: #{tpu_custom_call.1} parent=67 // pred_check_branch
          %1995 = sbr.rel (%p1993) target = $region72
        $region71: #{tpu_custom_call.1} parent=67 // pred_region
          %s1997 = ssub.s32 128, 128
          %1998 = vsyncadd %s1989, %s1997
          %s1999 = smul.addr %s26, 128
          %s2000 = scalar_lea.hbm %s12, %s1999
          %s2002 = sshll.u32 %s1992, 4
          %s2003 = int_to_ptr.vmem [resolvable:$true] %s2002
          %2005 = dma.vmem_to_hbm [thread:$0]  %s2003, 128, %s2000, %s1989
        $region72: #{tpu_custom_call.1} parent=67 // pred_fallthru
          _
      $region68: #{tpu_custom_call.1} parent=5 // pred_fallthru
        _
      %p2006 = scmp.le.s32.totalorder 2, %s21
      // Predicated region
      $region73: #{tpu_custom_call.1} parent=5 // pred_check
        %p2007 = pneg %p2006
      $region74: #{tpu_custom_call.1} parent=5 // pred_check_branch
        %2009 = sbr.rel (%p2007) target = $region76
      $region75: #{tpu_custom_call.1} parent=5 // pred_region
        %s2010 = ssub.s32 %s21, 2
        // Predicated region
        $region77: #{tpu_custom_call.1} parent=75 // pred_check
          %p2011 = pneg %p307
        $region78: #{tpu_custom_call.1} parent=75 // pred_check_branch
          %2013 = sbr.rel (%p2011) target = $region80
        $region79: #{tpu_custom_call.1} parent=75 // pred_region
          %s2014 = sand.u32 %s292, 1
          %s2015 = scalar_lea.sflag [#allocation4], %s2014
          %s2016 = sand.u32 %s292, 1
          %s2017 = smul.addr %s2016, 8
          %s2018 = scalar_lea.vmem [#allocation3], %s2017
          %2019 = dma.done %s2015, 128
        $region80: #{tpu_custom_call.1} parent=75 // pred_fallthru
          _
      $region76: #{tpu_custom_call.1} parent=5 // pred_fallthru
        _
    $region6: #{tpu_custom_call.1} parent=1 // loop_footer
      %s25 = sadd.s32 1, %s21
    $region7: #{tpu_custom_call.1} parent=1 // loop_footer_branch
      %20 = sbr.rel target = $region3
    $region8: #{tpu_custom_call.1} parent=1 // loop_exit
      _
    %2020 = vsyncpa [#allocation4], 1
    %s2021 = scalar_lea.sflag [#allocation4], 1
    %2022 = vsyncpa %s2021, 1

</llo_original>
